<compile_context>
chip_gen: v7x
topology: tpu7x:2x2x1
jax: 0.10.0
libtpu: 0.0.40
codegen_flags: <defaults>
</compile_context>

<pallas_src>
import jax
import jax.numpy as jnp
from jax.experimental import pallas as pl
from jax.experimental.pallas import tpu as pltpu

IN_CHN = 32      # summary_dim of the input data
EVID_DIM = 128   # hidden width of the evidential MLP
N_MODELS = 3     # number of candidate models (J)


def _softplus(z):
    # numerically-stable softplus, matches torch.nn.Softplus (beta=1)
    return jnp.maximum(z, 0.0) + jnp.log1p(jnp.exp(-jnp.abs(z)))


def evidential_kernel(x_ref,
                      w1_ref, b1_ref,
                      w2_ref, b2_ref,
                      w3_ref, b3_ref,
                      w4_ref, b4_ref,
                      out_ref):
    """Full forward pass of EvidentialNetwork.evidence() on one batch tile.

    dense:  3 x (Linear + ReLU)   -> MXU matmuls (f32 accumulate) + VPU max (f32)
    head:   Linear + Softplus + 1 -> MXU matmul + EUP exp/log (f32), lane-dense store
    """
    wdt = w1_ref.dtype                 # matmul operand dtype (f32 or bf16)
    x = x_ref[...]

    h = jnp.dot(x.astype(wdt), w1_ref[...],
                preferred_element_type=jnp.float32) + b1_ref[...]
    h = jnp.maximum(h, 0.0)

    h = jnp.dot(h.astype(wdt), w2_ref[...],
                preferred_element_type=jnp.float32) + b2_ref[...]
    h = jnp.maximum(h, 0.0)

    h = jnp.dot(h.astype(wdt), w3_ref[...],
                preferred_element_type=jnp.float32) + b3_ref[...]
    h = jnp.maximum(h, 0.0)

    z = jnp.dot(h.astype(wdt), w4_ref[...],
                preferred_element_type=jnp.float32) + b4_ref[...]
    alpha = _softplus(z) + 1.0         # padded lanes hold softplus(0)+1; sliced off outside

    out_ref[...] = alpha.astype(out_ref.dtype)


def evidential_forward(x, params, *, tile_m=256, matmul_dtype=jnp.float32):
    """alpha = evidence(x); x: (batch, in_chn) -> (batch, n_models).

    tile_m:       batch tile (multiple of 8; 256-512 is a good sweep range).
                  Keep >= 2 grid steps on v7x so the 'parallel' axis spans both TCs.
    matmul_dtype: jnp.float32 (exact) or jnp.bfloat16 (faster MXU on v5e/v6e/v7x,
                  ~1e-3 relative error; element-wise math stays f32 either way).
    """
    (w1, b1), (w2, b2), (w3, b3), (w4, b4) = params
    B, in_chn = x.shape
    evid_dim = w1.shape[1]
    n_models = w4.shape[1]

    # --- batch padding: big tiles for arbitrary batch sizes ---------------
    tile_m = max(8, (int(tile_m) // 8) * 8)
    n_tiles = pl.cdiv(B, tile_m)
    b_pad = n_tiles * tile_m
    if b_pad != B:
        x = jnp.pad(x, ((0, b_pad - B), (0, 0)))

    # --- lane-dense head: pad n_models -> multiple of 128 ------------------
    head_pad = max(128, ((n_models + 127) // 128) * 128)
    w4p = jnp.pad(w4, ((0, 0), (0, head_pad - n_models)))
    b4p = jnp.pad(b4, ((0, 0), (0, head_pad - n_models)))

    # --- matmul operand dtype (weights stored narrow, biases stay f32) -----
    w1c = w1.astype(matmul_dtype)
    w2c = w2.astype(matmul_dtype)
    w3c = w3.astype(matmul_dtype)
    w4c = w4p.astype(matmul_dtype)

    const = lambda i: (0, 0)   # weights/biases: same (whole) block for every tile

    # --- advisory cost estimate for the XLA scheduler -----------------------
    w_item = jnp.dtype(matmul_dtype).itemsize
    flops = 2 * b_pad * (in_chn * evid_dim + 2 * evid_dim * evid_dim
                         + evid_dim * head_pad)
    transcendentals = 2 * b_pad * head_pad  # exp + log1p in softplus
    bytes_accessed = (
        b_pad * in_chn * 4                                   # x
        + (in_chn * evid_dim + 2 * evid_dim * evid_dim
           + evid_dim * head_pad) * w_item                   # weights
        + (3 * evid_dim + head_pad) * 4                      # biases
        + b_pad * head_pad * 4)                              # output slab
    cost = pl.CostEstimate(flops=flops, transcendentals=transcendentals,
                           bytes_accessed=bytes_accessed)

    out = pl.pallas_call(
        evidential_kernel,
        out_shape=jax.ShapeDtypeStruct((b_pad, head_pad), jnp.float32),
        grid_spec=pltpu.PrefetchScalarGridSpec(
            num_scalar_prefetch=0,
            grid=(n_tiles,),
            in_specs=[
                pl.BlockSpec((tile_m, in_chn), lambda i: (i, 0)),    # x tile
                pl.BlockSpec((in_chn, evid_dim), const),             # W1
                pl.BlockSpec((1, evid_dim), const),                  # b1
                pl.BlockSpec((evid_dim, evid_dim), const),           # W2
                pl.BlockSpec((1, evid_dim), const),                  # b2
                pl.BlockSpec((evid_dim, evid_dim), const),           # W3
                pl.BlockSpec((1, evid_dim), const),                  # b3
                pl.BlockSpec((evid_dim, head_pad), const),           # W4 (lane-padded)
                pl.BlockSpec((1, head_pad), const),                  # b4 (lane-padded)
            ],
            out_specs=pl.BlockSpec((tile_m, head_pad), lambda i: (i, 0)),
        ),
        compiler_params=pltpu.CompilerParams(
            dimension_semantics=("parallel",)),
        cost_estimate=cost,
    )(x, w1c, b1, w2c, b2, w3c, b3, w4c, b4p)

    # drop batch padding and the padded output lanes (softplus(0)+1 junk)
    return out[:B, :n_models]


def init_params(key, in_chn=IN_CHN, evid_dim=EVID_DIM, n_models=N_MODELS):
    """Deterministic synthetic parameters (PyTorch-Linear-like uniform init)."""
    dims = [(in_chn, evid_dim), (evid_dim, evid_dim),
            (evid_dim, evid_dim), (evid_dim, n_models)]
    params = []
    for (fan_in, fan_out) in dims:
        key, kw, kb = jax.random.split(key, 3)
        bound = 1.0 / jnp.sqrt(fan_in)
        w = jax.random.uniform(kw, (fan_in, fan_out), jnp.float32, -bound, bound)
        b = jax.random.uniform(kb, (1, fan_out), jnp.float32, -bound, bound)
        params.append((w, b))
    return params


def reference_forward(x, params):
    """Pure-JAX reference of EvidentialNetwork.forward for verification."""
    h = x
    for i, (w, b) in enumerate(params):
        h = h @ w + b
        if i < 3:
            h = jnp.maximum(h, 0.0)
    return _softplus(h) + 1.0


# TODO(synk): predict()/sample() (Dirichlet moments & numpy Dirichlet sampling) are
# host-side post-processing of alpha and are not part of the kernelized forward.

if __name__ == "__main__":
    key = jax.random.PRNGKey(0)
    key, kx1, kx2 = jax.random.split(key, 3)
    params = init_params(key)

    # --- small batch: single padded tile ----------------------------------
    batch = 16
    x = jax.random.normal(kx1, (batch, IN_CHN), jnp.float32)
    alpha = jax.block_until_ready(evidential_forward(x, params, tile_m=256))
    ref = reference_forward(x, params)
    assert alpha.shape == (batch, N_MODELS)
    assert bool(jnp.all(alpha > 1.0))                 # alpha = softplus(.) + 1 > 1
    assert jnp.allclose(alpha, ref, atol=1e-5, rtol=1e-5)

    # --- odd batch, multi-step grid: exercises cdiv padding + tiling -------
    batch2 = 300
    x2 = jax.random.normal(kx2, (batch2, IN_CHN), jnp.float32)
    alpha2 = jax.block_until_ready(evidential_forward(x2, params, tile_m=128))
    ref2 = reference_forward(x2, params)
    assert alpha2.shape == (batch2, N_MODELS)
    assert jnp.allclose(alpha2, ref2, atol=1e-5, rtol=1e-5)

    # --- bf16 matmul operands (v6e/v7x fast path), looser tolerance --------
    alpha_bf16 = jax.block_until_ready(
        evidential_forward(x2, params, tile_m=128, matmul_dtype=jnp.bfloat16))
    assert jnp.allclose(alpha_bf16, ref2, atol=5e-2, rtol=5e-2)

    print("KERNEL_OK")
</pallas_src>

<mosaic_0001>
module attributes {stable_mosaic.version = 11 : i64} {
  func.func @evidential_kernel(%arg0: i32, %arg1: memref<256x32xf32, #tpu.memory_space<vmem>>, %arg2: memref<32x128xf32, #tpu.memory_space<vmem>>, %arg3: memref<1x128xf32, #tpu.memory_space<vmem>>, %arg4: memref<128x128xf32, #tpu.memory_space<vmem>>, %arg5: memref<1x128xf32, #tpu.memory_space<vmem>>, %arg6: memref<128x128xf32, #tpu.memory_space<vmem>>, %arg7: memref<1x128xf32, #tpu.memory_space<vmem>>, %arg8: memref<128x128xf32, #tpu.memory_space<vmem>>, %arg9: memref<1x128xf32, #tpu.memory_space<vmem>>, %arg10: memref<256x128xf32, #tpu.memory_space<vmem>>) attributes {dimension_semantics = [#tpu.dimension_semantics<parallel>], iteration_bounds = array<i64: 1>, scalar_prefetch = 0 : i64, scratch_operands = 0 : i64, tpu.core_type = #tpu.core_type<tc>, window_params = [{transform_indices = @transform_0, window_bounds = array<i64: 256, 32>}, {pipeline_mode = #tpu.pipeline_mode<synchronous>, transform_indices = @transform_1, window_bounds = array<i64: 32, 128>}, {pipeline_mode = #tpu.pipeline_mode<synchronous>, transform_indices = @transform_2, window_bounds = array<i64: 1, 128>}, {pipeline_mode = #tpu.pipeline_mode<synchronous>, transform_indices = @transform_3, window_bounds = array<i64: 128, 128>}, {pipeline_mode = #tpu.pipeline_mode<synchronous>, transform_indices = @transform_4, window_bounds = array<i64: 1, 128>}, {pipeline_mode = #tpu.pipeline_mode<synchronous>, transform_indices = @transform_5, window_bounds = array<i64: 128, 128>}, {pipeline_mode = #tpu.pipeline_mode<synchronous>, transform_indices = @transform_6, window_bounds = array<i64: 1, 128>}, {pipeline_mode = #tpu.pipeline_mode<synchronous>, transform_indices = @transform_7, window_bounds = array<i64: 128, 128>}, {pipeline_mode = #tpu.pipeline_mode<synchronous>, transform_indices = @transform_8, window_bounds = array<i64: 1, 128>}, {transform_indices = @transform_9, window_bounds = array<i64: 256, 128>}]} {
    %c0 = arith.constant 0 : index
    %c0_0 = arith.constant 0 : index
    %0 = vector.load %arg1[%c0, %c0_0] : memref<256x32xf32, #tpu.memory_space<vmem>>, vector<256x32xf32>
    %c0_1 = arith.constant 0 : index
    %c0_2 = arith.constant 0 : index
    %1 = vector.load %arg2[%c0_1, %c0_2] : memref<32x128xf32, #tpu.memory_space<vmem>>, vector<32x128xf32>
    %cst = arith.constant dense<0.000000e+00> : vector<256x128xf32>
    %2 = tpu.matmul %0, %1, %cst {dimension_numbers = #tpu.dot_dimension_numbers<[1], [0], [0], [1], [0, 0, 1, 1], [], []>} : vector<256x32xf32>, vector<32x128xf32>, vector<256x128xf32> -> vector<256x128xf32>
    %c0_3 = arith.constant 0 : index
    %c0_4 = arith.constant 0 : index
    %3 = vector.load %arg3[%c0_3, %c0_4] : memref<1x128xf32, #tpu.memory_space<vmem>>, vector<1x128xf32>
    %4 = vector.broadcast %3 : vector<1x128xf32> to vector<256x128xf32>
    %5 = arith.addf %2, %4 : vector<256x128xf32>
    %cst_5 = arith.constant 0.000000e+00 : f32
    %6 = vector.broadcast %cst_5 : f32 to vector<256x128xf32>
    %7 = arith.maximumf %5, %6 : vector<256x128xf32>
    %c0_6 = arith.constant 0 : index
    %c0_7 = arith.constant 0 : index
    %8 = vector.load %arg4[%c0_6, %c0_7] : memref<128x128xf32, #tpu.memory_space<vmem>>, vector<128x128xf32>
    %cst_8 = arith.constant dense<0.000000e+00> : vector<256x128xf32>
    %9 = tpu.matmul %7, %8, %cst_8 {dimension_numbers = #tpu.dot_dimension_numbers<[1], [0], [0], [1], [0, 0, 1, 1], [], []>} : vector<256x128xf32>, vector<128x128xf32>, vector<256x128xf32> -> vector<256x128xf32>
    %c0_9 = arith.constant 0 : index
    %c0_10 = arith.constant 0 : index
    %10 = vector.load %arg5[%c0_9, %c0_10] : memref<1x128xf32, #tpu.memory_space<vmem>>, vector<1x128xf32>
    %11 = vector.broadcast %10 : vector<1x128xf32> to vector<256x128xf32>
    %12 = arith.addf %9, %11 : vector<256x128xf32>
    %cst_11 = arith.constant 0.000000e+00 : f32
    %13 = vector.broadcast %cst_11 : f32 to vector<256x128xf32>
    %14 = arith.maximumf %12, %13 : vector<256x128xf32>
    %c0_12 = arith.constant 0 : index
    %c0_13 = arith.constant 0 : index
    %15 = vector.load %arg6[%c0_12, %c0_13] : memref<128x128xf32, #tpu.memory_space<vmem>>, vector<128x128xf32>
    %cst_14 = arith.constant dense<0.000000e+00> : vector<256x128xf32>
    %16 = tpu.matmul %14, %15, %cst_14 {dimension_numbers = #tpu.dot_dimension_numbers<[1], [0], [0], [1], [0, 0, 1, 1], [], []>} : vector<256x128xf32>, vector<128x128xf32>, vector<256x128xf32> -> vector<256x128xf32>
    %c0_15 = arith.constant 0 : index
    %c0_16 = arith.constant 0 : index
    %17 = vector.load %arg7[%c0_15, %c0_16] : memref<1x128xf32, #tpu.memory_space<vmem>>, vector<1x128xf32>
    %18 = vector.broadcast %17 : vector<1x128xf32> to vector<256x128xf32>
    %19 = arith.addf %16, %18 : vector<256x128xf32>
    %cst_17 = arith.constant 0.000000e+00 : f32
    %20 = vector.broadcast %cst_17 : f32 to vector<256x128xf32>
    %21 = arith.maximumf %19, %20 : vector<256x128xf32>
    %c0_18 = arith.constant 0 : index
    %c0_19 = arith.constant 0 : index
    %22 = vector.load %arg8[%c0_18, %c0_19] : memref<128x128xf32, #tpu.memory_space<vmem>>, vector<128x128xf32>
    %cst_20 = arith.constant dense<0.000000e+00> : vector<256x128xf32>
    %23 = tpu.matmul %21, %22, %cst_20 {dimension_numbers = #tpu.dot_dimension_numbers<[1], [0], [0], [1], [0, 0, 1, 1], [], []>} : vector<256x128xf32>, vector<128x128xf32>, vector<256x128xf32> -> vector<256x128xf32>
    %c0_21 = arith.constant 0 : index
    %c0_22 = arith.constant 0 : index
    %24 = vector.load %arg9[%c0_21, %c0_22] : memref<1x128xf32, #tpu.memory_space<vmem>>, vector<1x128xf32>
    %25 = vector.broadcast %24 : vector<1x128xf32> to vector<256x128xf32>
    %26 = arith.addf %23, %25 : vector<256x128xf32>
    %cst_23 = arith.constant 0.000000e+00 : f32
    %27 = vector.broadcast %cst_23 : f32 to vector<256x128xf32>
    %28 = arith.maximumf %26, %27 : vector<256x128xf32>
    %29 = math.absf %26 : vector<256x128xf32>
    %cst_24 = arith.constant 0.000000e+00 : f32
    %30 = vector.broadcast %cst_24 : f32 to vector<256x128xf32>
    %31 = arith.subf %30, %29 : vector<256x128xf32>
    %32 = math.exp %31 : vector<256x128xf32>
    %33 = math.log1p %32 : vector<256x128xf32>
    %34 = arith.addf %28, %33 : vector<256x128xf32>
    %cst_25 = arith.constant 1.000000e+00 : f32
    %35 = vector.broadcast %cst_25 : f32 to vector<256x128xf32>
    %36 = arith.addf %34, %35 : vector<256x128xf32>
    %c0_26 = arith.constant 0 : index
    %c0_27 = arith.constant 0 : index
    %37 = vector.load %arg10[%c0_26, %c0_27] : memref<256x128xf32, #tpu.memory_space<vmem>>, vector<256x128xf32>
    tpu.vector_store %arg10[%c0_26, %c0_27], %36 {strides = array<i32>} : memref<256x128xf32, #tpu.memory_space<vmem>>, vector<256x128xf32>,
    return
  }
  func.func @transform_0(%arg0: i32) -> (i32, i32) {
    %c0_i32 = arith.constant 0 : i32
    %c0_i32_0 = arith.constant 0 : i32
    return %arg0, %c0_i32 : i32, i32
  }
  func.func @transform_1(%arg0: i32) -> (i32, i32) {
    %c0_i32 = arith.constant 0 : i32
    %c0_i32_0 = arith.constant 0 : i32
    %c0_i32_1 = arith.constant 0 : i32
    return %c0_i32, %c0_i32_0 : i32, i32
  }
  func.func @transform_2(%arg0: i32) -> (i32, i32) {
    %c0_i32 = arith.constant 0 : i32
    %c0_i32_0 = arith.constant 0 : i32
    %c0_i32_1 = arith.constant 0 : i32
    return %c0_i32, %c0_i32_0 : i32, i32
  }
  func.func @transform_3(%arg0: i32) -> (i32, i32) {
    %c0_i32 = arith.constant 0 : i32
    %c0_i32_0 = arith.constant 0 : i32
    %c0_i32_1 = arith.constant 0 : i32
    return %c0_i32, %c0_i32_0 : i32, i32
  }
  func.func @transform_4(%arg0: i32) -> (i32, i32) {
    %c0_i32 = arith.constant 0 : i32
    %c0_i32_0 = arith.constant 0 : i32
    %c0_i32_1 = arith.constant 0 : i32
    return %c0_i32, %c0_i32_0 : i32, i32
  }
  func.func @transform_5(%arg0: i32) -> (i32, i32) {
    %c0_i32 = arith.constant 0 : i32
    %c0_i32_0 = arith.constant 0 : i32
    %c0_i32_1 = arith.constant 0 : i32
    return %c0_i32, %c0_i32_0 : i32, i32
  }
  func.func @transform_6(%arg0: i32) -> (i32, i32) {
    %c0_i32 = arith.constant 0 : i32
    %c0_i32_0 = arith.constant 0 : i32
    %c0_i32_1 = arith.constant 0 : i32
    return %c0_i32, %c0_i32_0 : i32, i32
  }
  func.func @transform_7(%arg0: i32) -> (i32, i32) {
    %c0_i32 = arith.constant 0 : i32
    %c0_i32_0 = arith.constant 0 : i32
    %c0_i32_1 = arith.constant 0 : i32
    return %c0_i32, %c0_i32_0 : i32, i32
  }
  func.func @transform_8(%arg0: i32) -> (i32, i32) {
    %c0_i32 = arith.constant 0 : i32
    %c0_i32_0 = arith.constant 0 : i32
    %c0_i32_1 = arith.constant 0 : i32
    return %c0_i32, %c0_i32_0 : i32, i32
  }
  func.func @transform_9(%arg0: i32) -> (i32, i32) {
    %c0_i32 = arith.constant 0 : i32
    %c0_i32_0 = arith.constant 0 : i32
    return %arg0, %c0_i32 : i32, i32
  }
}

</mosaic_0001>

<llo_original>
// kernel: tpu_custom_call.1
$region0: #{tpu_custom_call.1}
  #allocation0 [shape = 'u32[]', space=smem, size = 0x4, offset = 0x4, fixed_abs, tag = 'smem constant byte address 0x4 - core index']
  #allocation1 [shape = 'u32[144,128]{1,0:T(1,128)}', space=vmem, size = 0x12000, scoped, tag = 'internal scratch']
  %s0 = inlined_call_operand.vmem [shape: f32[256,32], index: 0, kind: input, shape index: {}]
  %s1 = inlined_call_operand.vmem [shape: f32[32,128], index: 1, kind: input, shape index: {}]
  %s2 = inlined_call_operand.vmem [shape: f32[1,128], index: 2, kind: input, shape index: {}]
  %s3 = inlined_call_operand.vmem [shape: f32[128,128], index: 3, kind: input, shape index: {}]
  %s4 = inlined_call_operand.vmem [shape: f32[1,128], index: 4, kind: input, shape index: {}]
  %s5 = inlined_call_operand.vmem [shape: f32[128,128], index: 5, kind: input, shape index: {}]
  %s6 = inlined_call_operand.vmem [shape: f32[1,128], index: 6, kind: input, shape index: {}]
  %s7 = inlined_call_operand.hbm [shape: f32[128,128], index: 7, kind: input, shape index: {}]
  %s8 = inlined_call_operand.vmem [shape: f32[1,128], index: 8, kind: input, shape index: {}]
  %s9 = inlined_call_operand.hbm [shape: f32[256,128], index: 9, kind: output, shape index: {}]
  %s10 = sld [smem:[#allocation0]]
  $region50: #{tpu_custom_call.1} parent=0
    _
  %s12 = ssub.s32 1, %s10
  %s13 = scalar_select 0, %s12, %s10
  $region1: #{tpu_custom_call.1} parent=0
    #allocation2 [shape = 'u8[65536]{0}', space=vmem, size = 0x10000, scoped, tag = 'input window, operand 7, single buffered']
    #allocation3 [shape = 's32[1]{0}', space=sflag, size = 0x4, scoped, tag = 'scoped memory for tpu_custom_call.1']
    #allocation4 [shape = 's32[1]{0}', space=sflag, size = 0x4, scoped, tag = 'scoped memory for tpu_custom_call.1']
    #allocation5 [shape = 'u8[131072]{0}', space=vmem, size = 0x20000, scoped, tag = 'output window, operand 0, single buffered']
    %14 = vsyncpa [#allocation3], 0
    %15 = vsyncpa [#allocation4], 0
    // Predicated region
    $region2: #{tpu_custom_call.1} parent=1 // pred_check
      _
    $region3: #{tpu_custom_call.1} parent=1 // pred_check_branch
      %17 = sbr.rel (0) target = $region5
    $region4: #{tpu_custom_call.1} parent=1 // pred_region
      _
    $region5: #{tpu_custom_call.1} parent=1 // pred_fallthru
      _
    // Predicated region
    $region6: #{tpu_custom_call.1} parent=1 // pred_check
      _
    $region7: #{tpu_custom_call.1} parent=1 // pred_check_branch
      %19 = sbr.rel (0) target = $region9
    $region8: #{tpu_custom_call.1} parent=1 // pred_region
      _
    $region9: #{tpu_custom_call.1} parent=1 // pred_fallthru
      _
    // Predicated region
    $region10: #{tpu_custom_call.1} parent=1 // pred_check
      _
    $region11: #{tpu_custom_call.1} parent=1 // pred_check_branch
      %21 = sbr.rel (0) target = $region13
    $region12: #{tpu_custom_call.1} parent=1 // pred_region
      _
    $region13: #{tpu_custom_call.1} parent=1 // pred_fallthru
      _
    // Predicated region
    $region14: #{tpu_custom_call.1} parent=1 // pred_check
      _
    $region15: #{tpu_custom_call.1} parent=1 // pred_check_branch
      %23 = sbr.rel (0) target = $region17
    $region16: #{tpu_custom_call.1} parent=1 // pred_region
      _
    $region17: #{tpu_custom_call.1} parent=1 // pred_fallthru
      _
    // Predicated region
    $region18: #{tpu_custom_call.1} parent=1 // pred_check
      _
    $region19: #{tpu_custom_call.1} parent=1 // pred_check_branch
      %25 = sbr.rel (0) target = $region21
    $region20: #{tpu_custom_call.1} parent=1 // pred_region
      _
    $region21: #{tpu_custom_call.1} parent=1 // pred_fallthru
      _
    // Predicated region
    $region22: #{tpu_custom_call.1} parent=1 // pred_check
      _
    $region23: #{tpu_custom_call.1} parent=1 // pred_check_branch
      %27 = sbr.rel (0) target = $region25
    $region24: #{tpu_custom_call.1} parent=1 // pred_region
      _
    $region25: #{tpu_custom_call.1} parent=1 // pred_fallthru
      _
    // Predicated region
    $region26: #{tpu_custom_call.1} parent=1 // pred_check
      _
    $region27: #{tpu_custom_call.1} parent=1 // pred_check_branch
      %29 = sbr.rel (0) target = $region29
    $region28: #{tpu_custom_call.1} parent=1 // pred_region
      _
    $region29: #{tpu_custom_call.1} parent=1 // pred_fallthru
      _
    // Predicated region
    $region30: #{tpu_custom_call.1} parent=1 // pred_check
      _
    $region31: #{tpu_custom_call.1} parent=1 // pred_check_branch
      %31 = sbr.rel (0) target = $region33
    $region32: #{tpu_custom_call.1} parent=1 // pred_region
      %s33 = ssub.s32 2048, 2048
      %34 = vsyncadd [#allocation3], %s33
      %s35 = sshll.u32 [#allocation2], 4
      %s36 = int_to_ptr.vmem [resolvable:$true] %s35
      %41 = dma.hbm_to_vmem [thread:$0]  %s7, 2048, %s36, [#allocation3], 128, 128, 8
    $region33: #{tpu_custom_call.1} parent=1 // pred_fallthru
      _
    // Predicated region
    $region34: #{tpu_custom_call.1} parent=1 // pred_check
      _
    $region35: #{tpu_custom_call.1} parent=1 // pred_check_branch
      %43 = sbr.rel (0) target = $region37
    $region36: #{tpu_custom_call.1} parent=1 // pred_region
      _
    $region37: #{tpu_custom_call.1} parent=1 // pred_fallthru
      _
    // Predicated region
    $region38: #{tpu_custom_call.1} parent=1 // pred_check
      _
    $region39: #{tpu_custom_call.1} parent=1 // pred_check_branch
      %45 = sbr.rel (0) target = $region41
    $region40: #{tpu_custom_call.1} parent=1 // pred_region
      %46 = dma.done [#allocation3], 2048
    $region41: #{tpu_custom_call.1} parent=1 // pred_fallthru
      _
    %v47 = vld [vmem:[%s0] sm:$0xff]
    %v48 = vld [vmem:[%s0 + $0x8] sm:$0xff]
    %v49 = vld [vmem:[%s0 + $0x10] sm:$0xff]
    %v50 = vld [vmem:[%s0 + $0x18] sm:$0xff]
    %v51 = vld [vmem:[%s0 + $0x20] sm:$0xff]
    %v52 = vld [vmem:[%s0 + $0x28] sm:$0xff]
    %v53 = vld [vmem:[%s0 + $0x30] sm:$0xff]
    %v54 = vld [vmem:[%s0 + $0x38] sm:$0xff]
    %v55 = vld [vmem:[%s0 + $0x40] sm:$0xff]
    %v56 = vld [vmem:[%s0 + $0x48] sm:$0xff]
    %v57 = vld [vmem:[%s0 + $0x50] sm:$0xff]
    %v58 = vld [vmem:[%s0 + $0x58] sm:$0xff]
    %v59 = vld [vmem:[%s0 + $0x60] sm:$0xff]
    %v60 = vld [vmem:[%s0 + $0x68] sm:$0xff]
    %v61 = vld [vmem:[%s0 + $0x70] sm:$0xff]
    %v62 = vld [vmem:[%s0 + $0x78] sm:$0xff]
    %v63 = vld [vmem:[%s0 + $0x80] sm:$0xff]
    %v64 = vld [vmem:[%s0 + $0x88] sm:$0xff]
    %v65 = vld [vmem:[%s0 + $0x90] sm:$0xff]
    %v66 = vld [vmem:[%s0 + $0x98] sm:$0xff]
    %v67 = vld [vmem:[%s0 + $0xa0] sm:$0xff]
    %v68 = vld [vmem:[%s0 + $0xa8] sm:$0xff]
    %v69 = vld [vmem:[%s0 + $0xb0] sm:$0xff]
    %v70 = vld [vmem:[%s0 + $0xb8] sm:$0xff]
    %v71 = vld [vmem:[%s0 + $0xc0] sm:$0xff]
    %v72 = vld [vmem:[%s0 + $0xc8] sm:$0xff]
    %v73 = vld [vmem:[%s0 + $0xd0] sm:$0xff]
    %v74 = vld [vmem:[%s0 + $0xd8] sm:$0xff]
    %v75 = vld [vmem:[%s0 + $0xe0] sm:$0xff]
    %v76 = vld [vmem:[%s0 + $0xe8] sm:$0xff]
    %v77 = vld [vmem:[%s0 + $0xf0] sm:$0xff]
    %v78 = vld [vmem:[%s0 + $0xf8] sm:$0xff]
    %v79 = vld [vmem:[%s1] sm:$0xff]
    %v80 = vld [vmem:[%s1 + $0x8] sm:$0xff]
    %v81 = vld [vmem:[%s1 + $0x10] sm:$0xff]
    %v82 = vld [vmem:[%s1 + $0x18] sm:$0xff]
    %v83 = vld [vmem:[%s2] sm:$0x1]
    %v85 = vlaneseq
    %v86 = vshrl.u32 %v85, 7
    %v87 = vsub.s32 0, %v86
    %v88 = vrot.slane %v83, %v87
    %vm90 = vcmask 261120
    %v92 = vsel %vm90, %v47, 0
    %v95 = vsel %vm90, %v48, 0
    %v98 = vsel %vm90, %v49, 0
    %v101 = vsel %vm90, %v50, 0
    %v104 = vsel %vm90, %v51, 0
    %v107 = vsel %vm90, %v52, 0
    %v110 = vsel %vm90, %v53, 0
    %v113 = vsel %vm90, %v54, 0
    %v116 = vsel %vm90, %v55, 0
    %v119 = vsel %vm90, %v56, 0
    %v122 = vsel %vm90, %v57, 0
    %v125 = vsel %vm90, %v58, 0
    %v128 = vsel %vm90, %v59, 0
    %v131 = vsel %vm90, %v60, 0
    %v134 = vsel %vm90, %v61, 0
    %v137 = vsel %vm90, %v62, 0
    %v140 = vsel %vm90, %v63, 0
    %v143 = vsel %vm90, %v64, 0
    %v146 = vsel %vm90, %v65, 0
    %v149 = vsel %vm90, %v66, 0
    %v152 = vsel %vm90, %v67, 0
    %v155 = vsel %vm90, %v68, 0
    %v158 = vsel %vm90, %v69, 0
    %v161 = vsel %vm90, %v70, 0
    %v164 = vsel %vm90, %v71, 0
    %v167 = vsel %vm90, %v72, 0
    %v170 = vsel %vm90, %v73, 0
    %v173 = vsel %vm90, %v74, 0
    %v176 = vsel %vm90, %v75, 0
    %v179 = vsel %vm90, %v76, 0
    %v182 = vsel %vm90, %v77, 0
    %v185 = vsel %vm90, %v78, 0
    %187 = vmatprep.subr.mxu0 0.0
    %188 = vmatpush1.msra.mxu0 %v79
    %189 = vmatprep.subr.mxu0 0.0
    %190 = vmatpush1.msra.mxu0 %v80
    %191 = vmatprep.subr.mxu0 0.0
    %192 = vmatpush1.msra.mxu0 %v81
    %193 = vmatprep.subr.mxu0 0.0
    %194 = vmatpush1.msra.mxu0 %v82
    %195 = vmatprep.subr.mxu0 0.0
    %196 = vmatpush1.msra.mxu0 0.0
    %197 = vmatprep.subr.mxu0 0.0
    %198 = vmatpush1.msra.mxu0 0.0
    %199 = vmatprep.subr.mxu0 0.0
    %200 = vmatpush1.msra.mxu0 0.0
    %201 = vmatprep.subr.mxu0 0.0
    %202 = vmatpush1.msra.mxu0 0.0
    %203 = vmatprep.subr.mxu0 0.0
    %204 = vmatpush1.msra.mxu0 0.0
    %205 = vmatprep.subr.mxu0 0.0
    %206 = vmatpush1.msra.mxu0 0.0
    %207 = vmatprep.subr.mxu0 0.0
    %208 = vmatpush1.msra.mxu0 0.0
    %209 = vmatprep.subr.mxu0 0.0
    %210 = vmatpush1.msra.mxu0 0.0
    %211 = vmatprep.subr.mxu0 0.0
    %212 = vmatpush1.msra.mxu0 0.0
    %213 = vmatprep.subr.mxu0 0.0
    %214 = vmatpush1.msra.mxu0 0.0
    %215 = vmatprep.subr.mxu0 0.0
    %216 = vmatpush1.msra.mxu0 0.0
    %217 = vmatprep.subr.mxu0 0.0
    %218 = vmatpush1.msra.mxu0 0.0
    %219 = vmatprep.subr.mxu0 0.0
    %220 = vmatpush1.msra.mxu0 0.0
    %221 = vmatprep.subr.mxu0 0.0
    %222 = vmatpush1.msra.mxu0 0.0
    %223 = vmatprep.subr.mxu0 0.0
    %224 = vmatpush1.msra.mxu0 0.0
    %225 = vmatprep.subr.mxu0 0.0
    %226 = vmatpush1.msra.mxu0 0.0
    %227 = vmatprep.subr.mxu0 0.0
    %228 = vmatpush1.msra.mxu0 0.0
    %229 = vmatprep.subr.mxu0 0.0
    %230 = vmatpush1.msra.mxu0 0.0
    %231 = vmatprep.subr.mxu0 0.0
    %232 = vmatpush1.msra.mxu0 0.0
    %233 = vmatprep.subr.mxu0 0.0
    %234 = vmatpush1.msra.mxu0 0.0
    %235 = vmatprep.subr.mxu0 0.0
    %236 = vmatpush1.msra.mxu0 0.0
    %237 = vmatprep.subr.mxu0 0.0
    %238 = vmatpush1.msra.mxu0 0.0
    %239 = vmatprep.subr.mxu0 0.0
    %240 = vmatpush1.msra.mxu0 0.0
    %241 = vmatprep.subr.mxu0 0.0
    %242 = vmatpush1.msra.mxu0 0.0
    %243 = vmatprep.subr.mxu0 0.0
    %244 = vmatpush1.msra.mxu0 0.0
    %245 = vmatprep.subr.mxu0 0.0
    %246 = vmatpush1.msra.mxu0 0.0
    %247 = vmatprep.subr.mxu0 0.0
    %248 = vmatpush1.msra.mxu0 0.0
    %249 = vmatprep.subr.mxu0 0.0
    %250 = vmatpush1.msra.mxu0 0.0
    %251 = vmatprep.mubr.f32.mxu0 0.0
    %252 = vmatmul.mubr.f32.gmra.mrb[0].mxu0 %v92
    %v253 = vpop.f32.mrb[0].mxu0
    %v254 = vadd.f32 %v88, %v253
    %v255 = vpop.f32.mrb[0].mxu0
    %256 = vmatprep.mubr.f32.mxu0 0.0
    %257 = vmatmul.mubr.f32.gmra.mrb[0].mxu0 %v95
    %v258 = vpop.f32.mrb[0].mxu0
    %v259 = vadd.f32 %v88, %v258
    %v260 = vpop.f32.mrb[0].mxu0
    %261 = vmatprep.mubr.f32.mxu0 0.0
    %262 = vmatmul.mubr.f32.gmra.mrb[0].mxu0 %v98
    %v263 = vpop.f32.mrb[0].mxu0
    %v264 = vadd.f32 %v88, %v263
    %v265 = vpop.f32.mrb[0].mxu0
    %266 = vmatprep.mubr.f32.mxu0 0.0
    %267 = vmatmul.mubr.f32.gmra.mrb[0].mxu0 %v101
    %v268 = vpop.f32.mrb[0].mxu0
    %v269 = vadd.f32 %v88, %v268
    %v270 = vpop.f32.mrb[0].mxu0
    %271 = vmatprep.mubr.f32.mxu0 0.0
    %272 = vmatmul.mubr.f32.gmra.mrb[0].mxu0 %v104
    %v273 = vpop.f32.mrb[0].mxu0
    %v274 = vadd.f32 %v88, %v273
    %v275 = vpop.f32.mrb[0].mxu0
    %276 = vmatprep.mubr.f32.mxu0 0.0
    %277 = vmatmul.mubr.f32.gmra.mrb[0].mxu0 %v107
    %v278 = vpop.f32.mrb[0].mxu0
    %v279 = vadd.f32 %v88, %v278
    %v280 = vpop.f32.mrb[0].mxu0
    %281 = vmatprep.mubr.f32.mxu0 0.0
    %282 = vmatmul.mubr.f32.gmra.mrb[0].mxu0 %v110
    %v283 = vpop.f32.mrb[0].mxu0
    %v284 = vadd.f32 %v88, %v283
    %v285 = vpop.f32.mrb[0].mxu0
    %286 = vmatprep.mubr.f32.mxu0 0.0
    %287 = vmatmul.mubr.f32.gmra.mrb[0].mxu0 %v113
    %v288 = vpop.f32.mrb[0].mxu0
    %v289 = vadd.f32 %v88, %v288
    %v290 = vpop.f32.mrb[0].mxu0
    %291 = vmatprep.mubr.f32.mxu0 0.0
    %292 = vmatmul.mubr.f32.gmra.mrb[0].mxu0 %v116
    %v293 = vpop.f32.mrb[0].mxu0
    %v294 = vadd.f32 %v88, %v293
    %v295 = vpop.f32.mrb[0].mxu0
    %296 = vmatprep.mubr.f32.mxu0 0.0
    %297 = vmatmul.mubr.f32.gmra.mrb[0].mxu0 %v119
    %v298 = vpop.f32.mrb[0].mxu0
    %v299 = vadd.f32 %v88, %v298
    %v300 = vpop.f32.mrb[0].mxu0
    %301 = vmatprep.mubr.f32.mxu0 0.0
    %302 = vmatmul.mubr.f32.gmra.mrb[0].mxu0 %v122
    %v303 = vpop.f32.mrb[0].mxu0
    %v304 = vadd.f32 %v88, %v303
    %v305 = vpop.f32.mrb[0].mxu0
    %306 = vmatprep.mubr.f32.mxu0 0.0
    %307 = vmatmul.mubr.f32.gmra.mrb[0].mxu0 %v125
    %v308 = vpop.f32.mrb[0].mxu0
    %v309 = vadd.f32 %v88, %v308
    %v310 = vpop.f32.mrb[0].mxu0
    %311 = vmatprep.mubr.f32.mxu0 0.0
    %312 = vmatmul.mubr.f32.gmra.mrb[0].mxu0 %v128
    %v313 = vpop.f32.mrb[0].mxu0
    %v314 = vadd.f32 %v88, %v313
    %v315 = vpop.f32.mrb[0].mxu0
    %316 = vmatprep.mubr.f32.mxu0 0.0
    %317 = vmatmul.mubr.f32.gmra.mrb[0].mxu0 %v131
    %v318 = vpop.f32.mrb[0].mxu0
    %v319 = vadd.f32 %v88, %v318
    %v320 = vpop.f32.mrb[0].mxu0
    %321 = vmatprep.mubr.f32.mxu0 0.0
    %322 = vmatmul.mubr.f32.gmra.mrb[0].mxu0 %v134
    %v323 = vpop.f32.mrb[0].mxu0
    %v324 = vadd.f32 %v88, %v323
    %v325 = vpop.f32.mrb[0].mxu0
    %326 = vmatprep.mubr.f32.mxu0 0.0
    %327 = vmatmul.mubr.f32.gmra.mrb[0].mxu0 %v137
    %v328 = vpop.f32.mrb[0].mxu0
    %v329 = vadd.f32 %v88, %v328
    %v330 = vpop.f32.mrb[0].mxu0
    %331 = vmatprep.mubr.f32.mxu0 0.0
    %332 = vmatmul.mubr.f32.gmra.mrb[0].mxu0 %v140
    %v333 = vpop.f32.mrb[0].mxu0
    %v334 = vadd.f32 %v88, %v333
    %v335 = vpop.f32.mrb[0].mxu0
    %336 = vmatprep.mubr.f32.mxu0 0.0
    %337 = vmatmul.mubr.f32.gmra.mrb[0].mxu0 %v143
    %v338 = vpop.f32.mrb[0].mxu0
    %v339 = vadd.f32 %v88, %v338
    %v340 = vpop.f32.mrb[0].mxu0
    %341 = vmatprep.mubr.f32.mxu0 0.0
    %342 = vmatmul.mubr.f32.gmra.mrb[0].mxu0 %v146
    %v343 = vpop.f32.mrb[0].mxu0
    %v344 = vadd.f32 %v88, %v343
    %v345 = vpop.f32.mrb[0].mxu0
    %346 = vmatprep.mubr.f32.mxu0 0.0
    %347 = vmatmul.mubr.f32.gmra.mrb[0].mxu0 %v149
    %v348 = vpop.f32.mrb[0].mxu0
    %v349 = vadd.f32 %v88, %v348
    %v350 = vpop.f32.mrb[0].mxu0
    %351 = vmatprep.mubr.f32.mxu0 0.0
    %352 = vmatmul.mubr.f32.gmra.mrb[0].mxu0 %v152
    %v353 = vpop.f32.mrb[0].mxu0
    %v354 = vadd.f32 %v88, %v353
    %v355 = vpop.f32.mrb[0].mxu0
    %356 = vmatprep.mubr.f32.mxu0 0.0
    %357 = vmatmul.mubr.f32.gmra.mrb[0].mxu0 %v155
    %v358 = vpop.f32.mrb[0].mxu0
    %v359 = vadd.f32 %v88, %v358
    %v360 = vpop.f32.mrb[0].mxu0
    %361 = vmatprep.mubr.f32.mxu0 0.0
    %362 = vmatmul.mubr.f32.gmra.mrb[0].mxu0 %v158
    %v363 = vpop.f32.mrb[0].mxu0
    %v364 = vadd.f32 %v88, %v363
    %v365 = vpop.f32.mrb[0].mxu0
    %366 = vmatprep.mubr.f32.mxu0 0.0
    %367 = vmatmul.mubr.f32.gmra.mrb[0].mxu0 %v161
    %v368 = vpop.f32.mrb[0].mxu0
    %v369 = vadd.f32 %v88, %v368
    %v370 = vpop.f32.mrb[0].mxu0
    %371 = vmatprep.mubr.f32.mxu0 0.0
    %372 = vmatmul.mubr.f32.gmra.mrb[0].mxu0 %v164
    %v373 = vpop.f32.mrb[0].mxu0
    %v374 = vadd.f32 %v88, %v373
    %v375 = vpop.f32.mrb[0].mxu0
    %376 = vmatprep.mubr.f32.mxu0 0.0
    %377 = vmatmul.mubr.f32.gmra.mrb[0].mxu0 %v167
    %v378 = vpop.f32.mrb[0].mxu0
    %v379 = vadd.f32 %v88, %v378
    %v380 = vpop.f32.mrb[0].mxu0
    %381 = vmatprep.mubr.f32.mxu0 0.0
    %382 = vmatmul.mubr.f32.gmra.mrb[0].mxu0 %v170
    %v383 = vpop.f32.mrb[0].mxu0
    %v384 = vadd.f32 %v88, %v383
    %v385 = vpop.f32.mrb[0].mxu0
    %386 = vmatprep.mubr.f32.mxu0 0.0
    %387 = vmatmul.mubr.f32.gmra.mrb[0].mxu0 %v173
    %v388 = vpop.f32.mrb[0].mxu0
    %v389 = vadd.f32 %v88, %v388
    %v390 = vpop.f32.mrb[0].mxu0
    %391 = vmatprep.mubr.f32.mxu0 0.0
    %392 = vmatmul.mubr.f32.gmra.mrb[0].mxu0 %v176
    %v393 = vpop.f32.mrb[0].mxu0
    %v394 = vadd.f32 %v88, %v393
    %v395 = vpop.f32.mrb[0].mxu0
    %396 = vmatprep.mubr.f32.mxu0 0.0
    %397 = vmatmul.mubr.f32.gmra.mrb[0].mxu0 %v179
    %v398 = vpop.f32.mrb[0].mxu0
    %v399 = vadd.f32 %v88, %v398
    %v400 = vpop.f32.mrb[0].mxu0
    %401 = vmatprep.mubr.f32.mxu0 0.0
    %402 = vmatmul.mubr.f32.gmra.mrb[0].mxu0 %v182
    %v403 = vpop.f32.mrb[0].mxu0
    %v404 = vadd.f32 %v88, %v403
    %v405 = vpop.f32.mrb[0].mxu0
    %406 = vmatprep.mubr.f32.mxu0 0.0
    %407 = vmatmul.mubr.f32.gmra.mrb[0].mxu0 %v185
    %v408 = vpop.f32.mrb[0].mxu0
    %v409 = vadd.f32 %v88, %v408
    %v410 = vpop.f32.mrb[0].mxu0
    %411 = vdwg.mxu0
    %v412 = vmax.f32 %v254, 0.0
    %v413 = vmax.f32 %v259, 0.0
    %v414 = vmax.f32 %v264, 0.0
    %v415 = vmax.f32 %v269, 0.0
    %v416 = vmax.f32 %v274, 0.0
    %v417 = vmax.f32 %v279, 0.0
    %v418 = vmax.f32 %v284, 0.0
    %v419 = vmax.f32 %v289, 0.0
    %v420 = vmax.f32 %v294, 0.0
    %v421 = vmax.f32 %v299, 0.0
    %v422 = vmax.f32 %v304, 0.0
    %v423 = vmax.f32 %v309, 0.0
    %v424 = vmax.f32 %v314, 0.0
    %v425 = vmax.f32 %v319, 0.0
    %v426 = vmax.f32 %v324, 0.0
    %v427 = vmax.f32 %v329, 0.0
    %v428 = vmax.f32 %v334, 0.0
    %v429 = vmax.f32 %v339, 0.0
    %v430 = vmax.f32 %v344, 0.0
    %v431 = vmax.f32 %v349, 0.0
    %v432 = vmax.f32 %v354, 0.0
    %v433 = vmax.f32 %v359, 0.0
    %v434 = vmax.f32 %v364, 0.0
    %v435 = vmax.f32 %v369, 0.0
    %v436 = vmax.f32 %v374, 0.0
    %v437 = vmax.f32 %v379, 0.0
    %v438 = vmax.f32 %v384, 0.0
    %v439 = vmax.f32 %v389, 0.0
    %v440 = vmax.f32 %v394, 0.0
    %v441 = vmax.f32 %v399, 0.0
    %v442 = vmax.f32 %v404, 0.0
    %v443 = vmax.f32 %v409, 0.0
    %v444 = vld [vmem:[%s3] sm:$0xff]
    %v445 = vld [vmem:[%s3 + $0x8] sm:$0xff]
    %v446 = vld [vmem:[%s3 + $0x10] sm:$0xff]
    %v447 = vld [vmem:[%s3 + $0x18] sm:$0xff]
    %v448 = vld [vmem:[%s3 + $0x20] sm:$0xff]
    %v449 = vld [vmem:[%s3 + $0x28] sm:$0xff]
    %v450 = vld [vmem:[%s3 + $0x30] sm:$0xff]
    %v451 = vld [vmem:[%s3 + $0x38] sm:$0xff]
    %v452 = vld [vmem:[%s3 + $0x40] sm:$0xff]
    %v453 = vld [vmem:[%s3 + $0x48] sm:$0xff]
    %v454 = vld [vmem:[%s3 + $0x50] sm:$0xff]
    %v455 = vld [vmem:[%s3 + $0x58] sm:$0xff]
    %v456 = vld [vmem:[%s3 + $0x60] sm:$0xff]
    %v457 = vld [vmem:[%s3 + $0x68] sm:$0xff]
    %v458 = vld [vmem:[%s3 + $0x70] sm:$0xff]
    %v459 = vld [vmem:[%s3 + $0x78] sm:$0xff]
    %v460 = vld [vmem:[%s4] sm:$0x1]
    %v462 = vlaneseq
    %v463 = vshrl.u32 %v462, 7
    %v464 = vsub.s32 0, %v463
    %v465 = vrot.slane %v460, %v464
    %467 = vmatprep.subr.mxu0 0.0
    %468 = vmatpush1.msra.mxu0 %v444
    %469 = vmatprep.subr.mxu0 0.0
    %470 = vmatpush1.msra.mxu0 %v445
    %471 = vmatprep.subr.mxu0 0.0
    %472 = vmatpush1.msra.mxu0 %v446
    %473 = vmatprep.subr.mxu0 0.0
    %474 = vmatpush1.msra.mxu0 %v447
    %475 = vmatprep.subr.mxu0 0.0
    %476 = vmatpush1.msra.mxu0 %v448
    %477 = vmatprep.subr.mxu0 0.0
    %478 = vmatpush1.msra.mxu0 %v449
    %479 = vmatprep.subr.mxu0 0.0
    %480 = vmatpush1.msra.mxu0 %v450
    %481 = vmatprep.subr.mxu0 0.0
    %482 = vmatpush1.msra.mxu0 %v451
    %483 = vmatprep.subr.mxu0 0.0
    %484 = vmatpush1.msra.mxu0 %v452
    %485 = vmatprep.subr.mxu0 0.0
    %486 = vmatpush1.msra.mxu0 %v453
    %487 = vmatprep.subr.mxu0 0.0
    %488 = vmatpush1.msra.mxu0 %v454
    %489 = vmatprep.subr.mxu0 0.0
    %490 = vmatpush1.msra.mxu0 %v455
    %491 = vmatprep.subr.mxu0 0.0
    %492 = vmatpush1.msra.mxu0 %v456
    %493 = vmatprep.subr.mxu0 0.0
    %494 = vmatpush1.msra.mxu0 %v457
    %495 = vmatprep.subr.mxu0 0.0
    %496 = vmatpush1.msra.mxu0 %v458
    %497 = vmatprep.subr.mxu0 0.0
    %498 = vmatpush1.msra.mxu0 %v459
    %499 = vmatprep.subr.mxu0 0.0
    %500 = vmatpush1.msra.mxu0 0.0
    %501 = vmatprep.subr.mxu0 0.0
    %502 = vmatpush1.msra.mxu0 0.0
    %503 = vmatprep.subr.mxu0 0.0
    %504 = vmatpush1.msra.mxu0 0.0
    %505 = vmatprep.subr.mxu0 0.0
    %506 = vmatpush1.msra.mxu0 0.0
    %507 = vmatprep.subr.mxu0 0.0
    %508 = vmatpush1.msra.mxu0 0.0
    %509 = vmatprep.subr.mxu0 0.0
    %510 = vmatpush1.msra.mxu0 0.0
    %511 = vmatprep.subr.mxu0 0.0
    %512 = vmatpush1.msra.mxu0 0.0
    %513 = vmatprep.subr.mxu0 0.0
    %514 = vmatpush1.msra.mxu0 0.0
    %515 = vmatprep.subr.mxu0 0.0
    %516 = vmatpush1.msra.mxu0 0.0
    %517 = vmatprep.subr.mxu0 0.0
    %518 = vmatpush1.msra.mxu0 0.0
    %519 = vmatprep.subr.mxu0 0.0
    %520 = vmatpush1.msra.mxu0 0.0
    %521 = vmatprep.subr.mxu0 0.0
    %522 = vmatpush1.msra.mxu0 0.0
    %523 = vmatprep.subr.mxu0 0.0
    %524 = vmatpush1.msra.mxu0 0.0
    %525 = vmatprep.subr.mxu0 0.0
    %526 = vmatpush1.msra.mxu0 0.0
    %527 = vmatprep.subr.mxu0 0.0
    %528 = vmatpush1.msra.mxu0 0.0
    %529 = vmatprep.subr.mxu0 0.0
    %530 = vmatpush1.msra.mxu0 0.0
    %531 = vmatprep.mubr.f32.mxu0 0.0
    %532 = vmatmul.mubr.f32.gmra.mrb[0].mxu0 %v412
    %v533 = vpop.f32.mrb[0].mxu0
    %v534 = vadd.f32 %v465, %v533
    %v535 = vpop.f32.mrb[0].mxu0
    %536 = vmatprep.mubr.f32.mxu0 0.0
    %537 = vmatmul.mubr.f32.gmra.mrb[0].mxu0 %v413
    %v538 = vpop.f32.mrb[0].mxu0
    %v539 = vadd.f32 %v465, %v538
    %v540 = vpop.f32.mrb[0].mxu0
    %541 = vmatprep.mubr.f32.mxu0 0.0
    %542 = vmatmul.mubr.f32.gmra.mrb[0].mxu0 %v414
    %v543 = vpop.f32.mrb[0].mxu0
    %v544 = vadd.f32 %v465, %v543
    %v545 = vpop.f32.mrb[0].mxu0
    %546 = vmatprep.mubr.f32.mxu0 0.0
    %547 = vmatmul.mubr.f32.gmra.mrb[0].mxu0 %v415
    %v548 = vpop.f32.mrb[0].mxu0
    %v549 = vadd.f32 %v465, %v548
    %v550 = vpop.f32.mrb[0].mxu0
    %551 = vmatprep.mubr.f32.mxu0 0.0
    %552 = vmatmul.mubr.f32.gmra.mrb[0].mxu0 %v416
    %v553 = vpop.f32.mrb[0].mxu0
    %v554 = vadd.f32 %v465, %v553
    %v555 = vpop.f32.mrb[0].mxu0
    %556 = vmatprep.mubr.f32.mxu0 0.0
    %557 = vmatmul.mubr.f32.gmra.mrb[0].mxu0 %v417
    %v558 = vpop.f32.mrb[0].mxu0
    %v559 = vadd.f32 %v465, %v558
    %v560 = vpop.f32.mrb[0].mxu0
    %561 = vmatprep.mubr.f32.mxu0 0.0
    %562 = vmatmul.mubr.f32.gmra.mrb[0].mxu0 %v418
    %v563 = vpop.f32.mrb[0].mxu0
    %v564 = vadd.f32 %v465, %v563
    %v565 = vpop.f32.mrb[0].mxu0
    %566 = vmatprep.mubr.f32.mxu0 0.0
    %567 = vmatmul.mubr.f32.gmra.mrb[0].mxu0 %v419
    %v568 = vpop.f32.mrb[0].mxu0
    %v569 = vadd.f32 %v465, %v568
    %v570 = vpop.f32.mrb[0].mxu0
    %571 = vmatprep.mubr.f32.mxu0 0.0
    %572 = vmatmul.mubr.f32.gmra.mrb[0].mxu0 %v420
    %v573 = vpop.f32.mrb[0].mxu0
    %v574 = vadd.f32 %v465, %v573
    %v575 = vpop.f32.mrb[0].mxu0
    %576 = vmatprep.mubr.f32.mxu0 0.0
    %577 = vmatmul.mubr.f32.gmra.mrb[0].mxu0 %v421
    %v578 = vpop.f32.mrb[0].mxu0
    %v579 = vadd.f32 %v465, %v578
    %v580 = vpop.f32.mrb[0].mxu0
    %581 = vmatprep.mubr.f32.mxu0 0.0
    %582 = vmatmul.mubr.f32.gmra.mrb[0].mxu0 %v422
    %v583 = vpop.f32.mrb[0].mxu0
    %v584 = vadd.f32 %v465, %v583
    %v585 = vpop.f32.mrb[0].mxu0
    %586 = vmatprep.mubr.f32.mxu0 0.0
    %587 = vmatmul.mubr.f32.gmra.mrb[0].mxu0 %v423
    %v588 = vpop.f32.mrb[0].mxu0
    %v589 = vadd.f32 %v465, %v588
    %v590 = vpop.f32.mrb[0].mxu0
    %591 = vmatprep.mubr.f32.mxu0 0.0
    %592 = vmatmul.mubr.f32.gmra.mrb[0].mxu0 %v424
    %v593 = vpop.f32.mrb[0].mxu0
    %v594 = vadd.f32 %v465, %v593
    %v595 = vpop.f32.mrb[0].mxu0
    %596 = vmatprep.mubr.f32.mxu0 0.0
    %597 = vmatmul.mubr.f32.gmra.mrb[0].mxu0 %v425
    %v598 = vpop.f32.mrb[0].mxu0
    %v599 = vadd.f32 %v465, %v598
    %v600 = vpop.f32.mrb[0].mxu0
    %601 = vmatprep.mubr.f32.mxu0 0.0
    %602 = vmatmul.mubr.f32.gmra.mrb[0].mxu0 %v426
    %v603 = vpop.f32.mrb[0].mxu0
    %v604 = vadd.f32 %v465, %v603
    %v605 = vpop.f32.mrb[0].mxu0
    %606 = vmatprep.mubr.f32.mxu0 0.0
    %607 = vmatmul.mubr.f32.gmra.mrb[0].mxu0 %v427
    %v608 = vpop.f32.mrb[0].mxu0
    %v609 = vadd.f32 %v465, %v608
    %v610 = vpop.f32.mrb[0].mxu0
    %611 = vmatprep.mubr.f32.mxu0 0.0
    %612 = vmatmul.mubr.f32.gmra.mrb[0].mxu0 %v428
    %v613 = vpop.f32.mrb[0].mxu0
    %v614 = vadd.f32 %v465, %v613
    %v615 = vpop.f32.mrb[0].mxu0
    %616 = vmatprep.mubr.f32.mxu0 0.0
    %617 = vmatmul.mubr.f32.gmra.mrb[0].mxu0 %v429
    %v618 = vpop.f32.mrb[0].mxu0
    %v619 = vadd.f32 %v465, %v618
    %v620 = vpop.f32.mrb[0].mxu0
    %621 = vmatprep.mubr.f32.mxu0 0.0
    %622 = vmatmul.mubr.f32.gmra.mrb[0].mxu0 %v430
    %v623 = vpop.f32.mrb[0].mxu0
    %v624 = vadd.f32 %v465, %v623
    %v625 = vpop.f32.mrb[0].mxu0
    %626 = vmatprep.mubr.f32.mxu0 0.0
    %627 = vmatmul.mubr.f32.gmra.mrb[0].mxu0 %v431
    %v628 = vpop.f32.mrb[0].mxu0
    %v629 = vadd.f32 %v465, %v628
    %v630 = vpop.f32.mrb[0].mxu0
    %631 = vmatprep.mubr.f32.mxu0 0.0
    %632 = vmatmul.mubr.f32.gmra.mrb[0].mxu0 %v432
    %v633 = vpop.f32.mrb[0].mxu0
    %v634 = vadd.f32 %v465, %v633
    %v635 = vpop.f32.mrb[0].mxu0
    %636 = vmatprep.mubr.f32.mxu0 0.0
    %637 = vmatmul.mubr.f32.gmra.mrb[0].mxu0 %v433
    %v638 = vpop.f32.mrb[0].mxu0
    %v639 = vadd.f32 %v465, %v638
    %v640 = vpop.f32.mrb[0].mxu0
    %641 = vmatprep.mubr.f32.mxu0 0.0
    %642 = vmatmul.mubr.f32.gmra.mrb[0].mxu0 %v434
    %v643 = vpop.f32.mrb[0].mxu0
    %v644 = vadd.f32 %v465, %v643
    %v645 = vpop.f32.mrb[0].mxu0
    %646 = vmatprep.mubr.f32.mxu0 0.0
    %647 = vmatmul.mubr.f32.gmra.mrb[0].mxu0 %v435
    %v648 = vpop.f32.mrb[0].mxu0
    %v649 = vadd.f32 %v465, %v648
    %v650 = vpop.f32.mrb[0].mxu0
    %651 = vmatprep.mubr.f32.mxu0 0.0
    %652 = vmatmul.mubr.f32.gmra.mrb[0].mxu0 %v436
    %v653 = vpop.f32.mrb[0].mxu0
    %v654 = vadd.f32 %v465, %v653
    %v655 = vpop.f32.mrb[0].mxu0
    %656 = vmatprep.mubr.f32.mxu0 0.0
    %657 = vmatmul.mubr.f32.gmra.mrb[0].mxu0 %v437
    %v658 = vpop.f32.mrb[0].mxu0
    %v659 = vadd.f32 %v465, %v658
    %v660 = vpop.f32.mrb[0].mxu0
    %661 = vmatprep.mubr.f32.mxu0 0.0
    %662 = vmatmul.mubr.f32.gmra.mrb[0].mxu0 %v438
    %v663 = vpop.f32.mrb[0].mxu0
    %v664 = vadd.f32 %v465, %v663
    %v665 = vpop.f32.mrb[0].mxu0
    %666 = vmatprep.mubr.f32.mxu0 0.0
    %667 = vmatmul.mubr.f32.gmra.mrb[0].mxu0 %v439
    %v668 = vpop.f32.mrb[0].mxu0
    %v669 = vadd.f32 %v465, %v668
    %v670 = vpop.f32.mrb[0].mxu0
    %671 = vmatprep.mubr.f32.mxu0 0.0
    %672 = vmatmul.mubr.f32.gmra.mrb[0].mxu0 %v440
    %v673 = vpop.f32.mrb[0].mxu0
    %v674 = vadd.f32 %v465, %v673
    %v675 = vpop.f32.mrb[0].mxu0
    %676 = vmatprep.mubr.f32.mxu0 0.0
    %677 = vmatmul.mubr.f32.gmra.mrb[0].mxu0 %v441
    %v678 = vpop.f32.mrb[0].mxu0
    %v679 = vadd.f32 %v465, %v678
    %v680 = vpop.f32.mrb[0].mxu0
    %681 = vmatprep.mubr.f32.mxu0 0.0
    %682 = vmatmul.mubr.f32.gmra.mrb[0].mxu0 %v442
    %v683 = vpop.f32.mrb[0].mxu0
    %v684 = vadd.f32 %v465, %v683
    %v685 = vpop.f32.mrb[0].mxu0
    %686 = vmatprep.mubr.f32.mxu0 0.0
    %687 = vmatmul.mubr.f32.gmra.mrb[0].mxu0 %v443
    %v688 = vpop.f32.mrb[0].mxu0
    %v689 = vadd.f32 %v465, %v688
    %v690 = vpop.f32.mrb[0].mxu0
    %691 = vdwg.mxu0
    %v692 = vmax.f32 %v534, 0.0
    %v693 = vmax.f32 %v539, 0.0
    %v694 = vmax.f32 %v544, 0.0
    %v695 = vmax.f32 %v549, 0.0
    %v696 = vmax.f32 %v554, 0.0
    %v697 = vmax.f32 %v559, 0.0
    %v698 = vmax.f32 %v564, 0.0
    %v699 = vmax.f32 %v569, 0.0
    %v700 = vmax.f32 %v574, 0.0
    %v701 = vmax.f32 %v579, 0.0
    %v702 = vmax.f32 %v584, 0.0
    %v703 = vmax.f32 %v589, 0.0
    %v704 = vmax.f32 %v594, 0.0
    %v705 = vmax.f32 %v599, 0.0
    %v706 = vmax.f32 %v604, 0.0
    %v707 = vmax.f32 %v609, 0.0
    %v708 = vmax.f32 %v614, 0.0
    %v709 = vmax.f32 %v619, 0.0
    %v710 = vmax.f32 %v624, 0.0
    %v711 = vmax.f32 %v629, 0.0
    %v712 = vmax.f32 %v634, 0.0
    %v713 = vmax.f32 %v639, 0.0
    %v714 = vmax.f32 %v644, 0.0
    %v715 = vmax.f32 %v649, 0.0
    %v716 = vmax.f32 %v654, 0.0
    %v717 = vmax.f32 %v659, 0.0
    %v718 = vmax.f32 %v664, 0.0
    %v719 = vmax.f32 %v669, 0.0
    %v720 = vmax.f32 %v674, 0.0
    %v721 = vmax.f32 %v679, 0.0
    %v722 = vmax.f32 %v684, 0.0
    %v723 = vmax.f32 %v689, 0.0
    %v724 = vld [vmem:[%s5] sm:$0xff]
    %v725 = vld [vmem:[%s5 + $0x8] sm:$0xff]
    %v726 = vld [vmem:[%s5 + $0x10] sm:$0xff]
    %v727 = vld [vmem:[%s5 + $0x18] sm:$0xff]
    %v728 = vld [vmem:[%s5 + $0x20] sm:$0xff]
    %v729 = vld [vmem:[%s5 + $0x28] sm:$0xff]
    %v730 = vld [vmem:[%s5 + $0x30] sm:$0xff]
    %v731 = vld [vmem:[%s5 + $0x38] sm:$0xff]
    %v732 = vld [vmem:[%s5 + $0x40] sm:$0xff]
    %v733 = vld [vmem:[%s5 + $0x48] sm:$0xff]
    %v734 = vld [vmem:[%s5 + $0x50] sm:$0xff]
    %v735 = vld [vmem:[%s5 + $0x58] sm:$0xff]
    %v736 = vld [vmem:[%s5 + $0x60] sm:$0xff]
    %v737 = vld [vmem:[%s5 + $0x68] sm:$0xff]
    %v738 = vld [vmem:[%s5 + $0x70] sm:$0xff]
    %v739 = vld [vmem:[%s5 + $0x78] sm:$0xff]
    %v740 = vld [vmem:[%s6] sm:$0x1]
    %v742 = vlaneseq
    %v743 = vshrl.u32 %v742, 7
    %v744 = vsub.s32 0, %v743
    %v745 = vrot.slane %v740, %v744
    %747 = vmatprep.subr.mxu0 0.0
    %748 = vmatpush1.msra.mxu0 %v724
    %749 = vmatprep.subr.mxu0 0.0
    %750 = vmatpush1.msra.mxu0 %v725
    %751 = vmatprep.subr.mxu0 0.0
    %752 = vmatpush1.msra.mxu0 %v726
    %753 = vmatprep.subr.mxu0 0.0
    %754 = vmatpush1.msra.mxu0 %v727
    %755 = vmatprep.subr.mxu0 0.0
    %756 = vmatpush1.msra.mxu0 %v728
    %757 = vmatprep.subr.mxu0 0.0
    %758 = vmatpush1.msra.mxu0 %v729
    %759 = vmatprep.subr.mxu0 0.0
    %760 = vmatpush1.msra.mxu0 %v730
    %761 = vmatprep.subr.mxu0 0.0
    %762 = vmatpush1.msra.mxu0 %v731
    %763 = vmatprep.subr.mxu0 0.0
    %764 = vmatpush1.msra.mxu0 %v732
    %765 = vmatprep.subr.mxu0 0.0
    %766 = vmatpush1.msra.mxu0 %v733
    %767 = vmatprep.subr.mxu0 0.0
    %768 = vmatpush1.msra.mxu0 %v734
    %769 = vmatprep.subr.mxu0 0.0
    %770 = vmatpush1.msra.mxu0 %v735
    %771 = vmatprep.subr.mxu0 0.0
    %772 = vmatpush1.msra.mxu0 %v736
    %773 = vmatprep.subr.mxu0 0.0
    %774 = vmatpush1.msra.mxu0 %v737
    %775 = vmatprep.subr.mxu0 0.0
    %776 = vmatpush1.msra.mxu0 %v738
    %777 = vmatprep.subr.mxu0 0.0
    %778 = vmatpush1.msra.mxu0 %v739
    %779 = vmatprep.subr.mxu0 0.0
    %780 = vmatpush1.msra.mxu0 0.0
    %781 = vmatprep.subr.mxu0 0.0
    %782 = vmatpush1.msra.mxu0 0.0
    %783 = vmatprep.subr.mxu0 0.0
    %784 = vmatpush1.msra.mxu0 0.0
    %785 = vmatprep.subr.mxu0 0.0
    %786 = vmatpush1.msra.mxu0 0.0
    %787 = vmatprep.subr.mxu0 0.0
    %788 = vmatpush1.msra.mxu0 0.0
    %789 = vmatprep.subr.mxu0 0.0
    %790 = vmatpush1.msra.mxu0 0.0
    %791 = vmatprep.subr.mxu0 0.0
    %792 = vmatpush1.msra.mxu0 0.0
    %793 = vmatprep.subr.mxu0 0.0
    %794 = vmatpush1.msra.mxu0 0.0
    %795 = vmatprep.subr.mxu0 0.0
    %796 = vmatpush1.msra.mxu0 0.0
    %797 = vmatprep.subr.mxu0 0.0
    %798 = vmatpush1.msra.mxu0 0.0
    %799 = vmatprep.subr.mxu0 0.0
    %800 = vmatpush1.msra.mxu0 0.0
    %801 = vmatprep.subr.mxu0 0.0
    %802 = vmatpush1.msra.mxu0 0.0
    %803 = vmatprep.subr.mxu0 0.0
    %804 = vmatpush1.msra.mxu0 0.0
    %805 = vmatprep.subr.mxu0 0.0
    %806 = vmatpush1.msra.mxu0 0.0
    %807 = vmatprep.subr.mxu0 0.0
    %808 = vmatpush1.msra.mxu0 0.0
    %809 = vmatprep.subr.mxu0 0.0
    %810 = vmatpush1.msra.mxu0 0.0
    %811 = vmatprep.mubr.f32.mxu0 0.0
    %812 = vmatmul.mubr.f32.gmra.mrb[0].mxu0 %v692
    %v813 = vpop.f32.mrb[0].mxu0
    %v814 = vadd.f32 %v745, %v813
    %v815 = vpop.f32.mrb[0].mxu0
    %816 = vmatprep.mubr.f32.mxu0 0.0
    %817 = vmatmul.mubr.f32.gmra.mrb[0].mxu0 %v693
    %v818 = vpop.f32.mrb[0].mxu0
    %v819 = vadd.f32 %v745, %v818
    %v820 = vpop.f32.mrb[0].mxu0
    %821 = vmatprep.mubr.f32.mxu0 0.0
    %822 = vmatmul.mubr.f32.gmra.mrb[0].mxu0 %v694
    %v823 = vpop.f32.mrb[0].mxu0
    %v824 = vadd.f32 %v745, %v823
    %v825 = vpop.f32.mrb[0].mxu0
    %826 = vmatprep.mubr.f32.mxu0 0.0
    %827 = vmatmul.mubr.f32.gmra.mrb[0].mxu0 %v695
    %v828 = vpop.f32.mrb[0].mxu0
    %v829 = vadd.f32 %v745, %v828
    %v830 = vpop.f32.mrb[0].mxu0
    %831 = vmatprep.mubr.f32.mxu0 0.0
    %832 = vmatmul.mubr.f32.gmra.mrb[0].mxu0 %v696
    %v833 = vpop.f32.mrb[0].mxu0
    %v834 = vadd.f32 %v745, %v833
    %v835 = vpop.f32.mrb[0].mxu0
    %836 = vmatprep.mubr.f32.mxu0 0.0
    %837 = vmatmul.mubr.f32.gmra.mrb[0].mxu0 %v697
    %v838 = vpop.f32.mrb[0].mxu0
    %v839 = vadd.f32 %v745, %v838
    %v840 = vpop.f32.mrb[0].mxu0
    %841 = vmatprep.mubr.f32.mxu0 0.0
    %842 = vmatmul.mubr.f32.gmra.mrb[0].mxu0 %v698
    %v843 = vpop.f32.mrb[0].mxu0
    %v844 = vadd.f32 %v745, %v843
    %v845 = vpop.f32.mrb[0].mxu0
    %846 = vmatprep.mubr.f32.mxu0 0.0
    %847 = vmatmul.mubr.f32.gmra.mrb[0].mxu0 %v699
    %v848 = vpop.f32.mrb[0].mxu0
    %v849 = vadd.f32 %v745, %v848
    %v850 = vpop.f32.mrb[0].mxu0
    %851 = vmatprep.mubr.f32.mxu0 0.0
    %852 = vmatmul.mubr.f32.gmra.mrb[0].mxu0 %v700
    %v853 = vpop.f32.mrb[0].mxu0
    %v854 = vadd.f32 %v745, %v853
    %v855 = vpop.f32.mrb[0].mxu0
    %856 = vmatprep.mubr.f32.mxu0 0.0
    %857 = vmatmul.mubr.f32.gmra.mrb[0].mxu0 %v701
    %v858 = vpop.f32.mrb[0].mxu0
    %v859 = vadd.f32 %v745, %v858
    %v860 = vpop.f32.mrb[0].mxu0
    %861 = vmatprep.mubr.f32.mxu0 0.0
    %862 = vmatmul.mubr.f32.gmra.mrb[0].mxu0 %v702
    %v863 = vpop.f32.mrb[0].mxu0
    %v864 = vadd.f32 %v745, %v863
    %v865 = vpop.f32.mrb[0].mxu0
    %866 = vmatprep.mubr.f32.mxu0 0.0
    %867 = vmatmul.mubr.f32.gmra.mrb[0].mxu0 %v703
    %v868 = vpop.f32.mrb[0].mxu0
    %v869 = vadd.f32 %v745, %v868
    %v870 = vpop.f32.mrb[0].mxu0
    %871 = vmatprep.mubr.f32.mxu0 0.0
    %872 = vmatmul.mubr.f32.gmra.mrb[0].mxu0 %v704
    %v873 = vpop.f32.mrb[0].mxu0
    %v874 = vadd.f32 %v745, %v873
    %v875 = vpop.f32.mrb[0].mxu0
    %876 = vmatprep.mubr.f32.mxu0 0.0
    %877 = vmatmul.mubr.f32.gmra.mrb[0].mxu0 %v705
    %v878 = vpop.f32.mrb[0].mxu0
    %v879 = vadd.f32 %v745, %v878
    %v880 = vpop.f32.mrb[0].mxu0
    %881 = vmatprep.mubr.f32.mxu0 0.0
    %882 = vmatmul.mubr.f32.gmra.mrb[0].mxu0 %v706
    %v883 = vpop.f32.mrb[0].mxu0
    %v884 = vadd.f32 %v745, %v883
    %v885 = vpop.f32.mrb[0].mxu0
    %886 = vmatprep.mubr.f32.mxu0 0.0
    %887 = vmatmul.mubr.f32.gmra.mrb[0].mxu0 %v707
    %v888 = vpop.f32.mrb[0].mxu0
    %v889 = vadd.f32 %v745, %v888
    %v890 = vpop.f32.mrb[0].mxu0
    %891 = vmatprep.mubr.f32.mxu0 0.0
    %892 = vmatmul.mubr.f32.gmra.mrb[0].mxu0 %v708
    %v893 = vpop.f32.mrb[0].mxu0
    %v894 = vadd.f32 %v745, %v893
    %v895 = vpop.f32.mrb[0].mxu0
    %896 = vmatprep.mubr.f32.mxu0 0.0
    %897 = vmatmul.mubr.f32.gmra.mrb[0].mxu0 %v709
    %v898 = vpop.f32.mrb[0].mxu0
    %v899 = vadd.f32 %v745, %v898
    %v900 = vpop.f32.mrb[0].mxu0
    %901 = vmatprep.mubr.f32.mxu0 0.0
    %902 = vmatmul.mubr.f32.gmra.mrb[0].mxu0 %v710
    %v903 = vpop.f32.mrb[0].mxu0
    %v904 = vadd.f32 %v745, %v903
    %v905 = vpop.f32.mrb[0].mxu0
    %906 = vmatprep.mubr.f32.mxu0 0.0
    %907 = vmatmul.mubr.f32.gmra.mrb[0].mxu0 %v711
    %v908 = vpop.f32.mrb[0].mxu0
    %v909 = vadd.f32 %v745, %v908
    %v910 = vpop.f32.mrb[0].mxu0
    %911 = vmatprep.mubr.f32.mxu0 0.0
    %912 = vmatmul.mubr.f32.gmra.mrb[0].mxu0 %v712
    %v913 = vpop.f32.mrb[0].mxu0
    %v914 = vadd.f32 %v745, %v913
    %v915 = vpop.f32.mrb[0].mxu0
    %916 = vmatprep.mubr.f32.mxu0 0.0
    %917 = vmatmul.mubr.f32.gmra.mrb[0].mxu0 %v713
    %v918 = vpop.f32.mrb[0].mxu0
    %v919 = vadd.f32 %v745, %v918
    %v920 = vpop.f32.mrb[0].mxu0
    %921 = vmatprep.mubr.f32.mxu0 0.0
    %922 = vmatmul.mubr.f32.gmra.mrb[0].mxu0 %v714
    %v923 = vpop.f32.mrb[0].mxu0
    %v924 = vadd.f32 %v745, %v923
    %v925 = vpop.f32.mrb[0].mxu0
    %926 = vmatprep.mubr.f32.mxu0 0.0
    %927 = vmatmul.mubr.f32.gmra.mrb[0].mxu0 %v715
    %v928 = vpop.f32.mrb[0].mxu0
    %v929 = vadd.f32 %v745, %v928
    %v930 = vpop.f32.mrb[0].mxu0
    %931 = vmatprep.mubr.f32.mxu0 0.0
    %932 = vmatmul.mubr.f32.gmra.mrb[0].mxu0 %v716
    %v933 = vpop.f32.mrb[0].mxu0
    %v934 = vadd.f32 %v745, %v933
    %v935 = vpop.f32.mrb[0].mxu0
    %936 = vmatprep.mubr.f32.mxu0 0.0
    %937 = vmatmul.mubr.f32.gmra.mrb[0].mxu0 %v717
    %v938 = vpop.f32.mrb[0].mxu0
    %v939 = vadd.f32 %v745, %v938
    %v940 = vpop.f32.mrb[0].mxu0
    %941 = vmatprep.mubr.f32.mxu0 0.0
    %942 = vmatmul.mubr.f32.gmra.mrb[0].mxu0 %v718
    %v943 = vpop.f32.mrb[0].mxu0
    %v944 = vadd.f32 %v745, %v943
    %v945 = vpop.f32.mrb[0].mxu0
    %946 = vmatprep.mubr.f32.mxu0 0.0
    %947 = vmatmul.mubr.f32.gmra.mrb[0].mxu0 %v719
    %v948 = vpop.f32.mrb[0].mxu0
    %v949 = vadd.f32 %v745, %v948
    %v950 = vpop.f32.mrb[0].mxu0
    %951 = vmatprep.mubr.f32.mxu0 0.0
    %952 = vmatmul.mubr.f32.gmra.mrb[0].mxu0 %v720
    %v953 = vpop.f32.mrb[0].mxu0
    %v954 = vadd.f32 %v745, %v953
    %v955 = vpop.f32.mrb[0].mxu0
    %956 = vmatprep.mubr.f32.mxu0 0.0
    %957 = vmatmul.mubr.f32.gmra.mrb[0].mxu0 %v721
    %v958 = vpop.f32.mrb[0].mxu0
    %v959 = vadd.f32 %v745, %v958
    %v960 = vpop.f32.mrb[0].mxu0
    %961 = vmatprep.mubr.f32.mxu0 0.0
    %962 = vmatmul.mubr.f32.gmra.mrb[0].mxu0 %v722
    %v963 = vpop.f32.mrb[0].mxu0
    %v964 = vadd.f32 %v745, %v963
    %v965 = vpop.f32.mrb[0].mxu0
    %966 = vmatprep.mubr.f32.mxu0 0.0
    %967 = vmatmul.mubr.f32.gmra.mrb[0].mxu0 %v723
    %v968 = vpop.f32.mrb[0].mxu0
    %v969 = vadd.f32 %v745, %v968
    %v970 = vpop.f32.mrb[0].mxu0
    %971 = vdwg.mxu0
    %v972 = vmax.f32 %v814, 0.0
    %v973 = vmax.f32 %v819, 0.0
    %v974 = vmax.f32 %v824, 0.0
    %v975 = vmax.f32 %v829, 0.0
    %v976 = vmax.f32 %v834, 0.0
    %v977 = vmax.f32 %v839, 0.0
    %v978 = vmax.f32 %v844, 0.0
    %v979 = vmax.f32 %v849, 0.0
    %v980 = vmax.f32 %v854, 0.0
    %v981 = vmax.f32 %v859, 0.0
    %v982 = vmax.f32 %v864, 0.0
    %v983 = vmax.f32 %v869, 0.0
    %v984 = vmax.f32 %v874, 0.0
    %v985 = vmax.f32 %v879, 0.0
    %v986 = vmax.f32 %v884, 0.0
    %v987 = vmax.f32 %v889, 0.0
    %v988 = vmax.f32 %v894, 0.0
    %v989 = vmax.f32 %v899, 0.0
    %v990 = vmax.f32 %v904, 0.0
    %v991 = vmax.f32 %v909, 0.0
    %v992 = vmax.f32 %v914, 0.0
    %v993 = vmax.f32 %v919, 0.0
    %v994 = vmax.f32 %v924, 0.0
    %v995 = vmax.f32 %v929, 0.0
    %v996 = vmax.f32 %v934, 0.0
    %v997 = vmax.f32 %v939, 0.0
    %v998 = vmax.f32 %v944, 0.0
    %v999 = vmax.f32 %v949, 0.0
    %v1000 = vmax.f32 %v954, 0.0
    %v1001 = vmax.f32 %v959, 0.0
    %v1002 = vmax.f32 %v964, 0.0
    %v1003 = vmax.f32 %v969, 0.0
    %v1004 = vld [vmem:[#allocation2] sm:$0xff]
    %v1005 = vld [vmem:[#allocation2 + $0x8] sm:$0xff]
    %v1006 = vld [vmem:[#allocation2 + $0x10] sm:$0xff]
    %v1007 = vld [vmem:[#allocation2 + $0x18] sm:$0xff]
    %v1008 = vld [vmem:[#allocation2 + $0x20] sm:$0xff]
    %v1009 = vld [vmem:[#allocation2 + $0x28] sm:$0xff]
    %v1010 = vld [vmem:[#allocation2 + $0x30] sm:$0xff]
    %v1011 = vld [vmem:[#allocation2 + $0x38] sm:$0xff]
    %v1012 = vld [vmem:[#allocation2 + $0x40] sm:$0xff]
    %v1013 = vld [vmem:[#allocation2 + $0x48] sm:$0xff]
    %v1014 = vld [vmem:[#allocation2 + $0x50] sm:$0xff]
    %v1015 = vld [vmem:[#allocation2 + $0x58] sm:$0xff]
    %v1016 = vld [vmem:[#allocation2 + $0x60] sm:$0xff]
    %v1017 = vld [vmem:[#allocation2 + $0x68] sm:$0xff]
    %v1018 = vld [vmem:[#allocation2 + $0x70] sm:$0xff]
    %v1019 = vld [vmem:[#allocation2 + $0x78] sm:$0xff]
    %v1020 = vld [vmem:[%s8] sm:$0x1]
    %v1022 = vlaneseq
    %v1023 = vshrl.u32 %v1022, 7
    %v1024 = vsub.s32 0, %v1023
    %v1025 = vrot.slane %v1020, %v1024
    %1027 = vmatprep.subr.mxu0 0.0
    %1028 = vmatpush1.msra.mxu0 %v1004
    %1029 = vmatprep.subr.mxu0 0.0
    %1030 = vmatpush1.msra.mxu0 %v1005
    %1031 = vmatprep.subr.mxu0 0.0
    %1032 = vmatpush1.msra.mxu0 %v1006
    %1033 = vmatprep.subr.mxu0 0.0
    %1034 = vmatpush1.msra.mxu0 %v1007
    %1035 = vmatprep.subr.mxu0 0.0
    %1036 = vmatpush1.msra.mxu0 %v1008
    %1037 = vmatprep.subr.mxu0 0.0
    %1038 = vmatpush1.msra.mxu0 %v1009
    %1039 = vmatprep.subr.mxu0 0.0
    %1040 = vmatpush1.msra.mxu0 %v1010
    %1041 = vmatprep.subr.mxu0 0.0
    %1042 = vmatpush1.msra.mxu0 %v1011
    %1043 = vmatprep.subr.mxu0 0.0
    %1044 = vmatpush1.msra.mxu0 %v1012
    %1045 = vmatprep.subr.mxu0 0.0
    %1046 = vmatpush1.msra.mxu0 %v1013
    %1047 = vmatprep.subr.mxu0 0.0
    %1048 = vmatpush1.msra.mxu0 %v1014
    %1049 = vmatprep.subr.mxu0 0.0
    %1050 = vmatpush1.msra.mxu0 %v1015
    %1051 = vmatprep.subr.mxu0 0.0
    %1052 = vmatpush1.msra.mxu0 %v1016
    %1053 = vmatprep.subr.mxu0 0.0
    %1054 = vmatpush1.msra.mxu0 %v1017
    %1055 = vmatprep.subr.mxu0 0.0
    %1056 = vmatpush1.msra.mxu0 %v1018
    %1057 = vmatprep.subr.mxu0 0.0
    %1058 = vmatpush1.msra.mxu0 %v1019
    %1059 = vmatprep.subr.mxu0 0.0
    %1060 = vmatpush1.msra.mxu0 0.0
    %1061 = vmatprep.subr.mxu0 0.0
    %1062 = vmatpush1.msra.mxu0 0.0
    %1063 = vmatprep.subr.mxu0 0.0
    %1064 = vmatpush1.msra.mxu0 0.0
    %1065 = vmatprep.subr.mxu0 0.0
    %1066 = vmatpush1.msra.mxu0 0.0
    %1067 = vmatprep.subr.mxu0 0.0
    %1068 = vmatpush1.msra.mxu0 0.0
    %1069 = vmatprep.subr.mxu0 0.0
    %1070 = vmatpush1.msra.mxu0 0.0
    %1071 = vmatprep.subr.mxu0 0.0
    %1072 = vmatpush1.msra.mxu0 0.0
    %1073 = vmatprep.subr.mxu0 0.0
    %1074 = vmatpush1.msra.mxu0 0.0
    %1075 = vmatprep.subr.mxu0 0.0
    %1076 = vmatpush1.msra.mxu0 0.0
    %1077 = vmatprep.subr.mxu0 0.0
    %1078 = vmatpush1.msra.mxu0 0.0
    %1079 = vmatprep.subr.mxu0 0.0
    %1080 = vmatpush1.msra.mxu0 0.0
    %1081 = vmatprep.subr.mxu0 0.0
    %1082 = vmatpush1.msra.mxu0 0.0
    %1083 = vmatprep.subr.mxu0 0.0
    %1084 = vmatpush1.msra.mxu0 0.0
    %1085 = vmatprep.subr.mxu0 0.0
    %1086 = vmatpush1.msra.mxu0 0.0
    %1087 = vmatprep.subr.mxu0 0.0
    %1088 = vmatpush1.msra.mxu0 0.0
    %1089 = vmatprep.subr.mxu0 0.0
    %1090 = vmatpush1.msra.mxu0 0.0
    %1091 = vmatprep.mubr.f32.mxu0 0.0
    %1092 = vmatmul.mubr.f32.gmra.mrb[0].mxu0 %v972
    %v1093 = vpop.f32.mrb[0].mxu0
    %v1094 = vadd.f32 %v1025, %v1093
    %v1095 = vpop.f32.mrb[0].mxu0
    %1096 = vmatprep.mubr.f32.mxu0 0.0
    %1097 = vmatmul.mubr.f32.gmra.mrb[0].mxu0 %v973
    %v1098 = vpop.f32.mrb[0].mxu0
    %v1099 = vadd.f32 %v1025, %v1098
    %v1100 = vpop.f32.mrb[0].mxu0
    %1101 = vmatprep.mubr.f32.mxu0 0.0
    %1102 = vmatmul.mubr.f32.gmra.mrb[0].mxu0 %v974
    %v1103 = vpop.f32.mrb[0].mxu0
    %v1104 = vadd.f32 %v1025, %v1103
    %v1105 = vpop.f32.mrb[0].mxu0
    %1106 = vmatprep.mubr.f32.mxu0 0.0
    %1107 = vmatmul.mubr.f32.gmra.mrb[0].mxu0 %v975
    %v1108 = vpop.f32.mrb[0].mxu0
    %v1109 = vadd.f32 %v1025, %v1108
    %v1110 = vpop.f32.mrb[0].mxu0
    %1111 = vmatprep.mubr.f32.mxu0 0.0
    %1112 = vmatmul.mubr.f32.gmra.mrb[0].mxu0 %v976
    %v1113 = vpop.f32.mrb[0].mxu0
    %v1114 = vadd.f32 %v1025, %v1113
    %v1115 = vpop.f32.mrb[0].mxu0
    %1116 = vmatprep.mubr.f32.mxu0 0.0
    %1117 = vmatmul.mubr.f32.gmra.mrb[0].mxu0 %v977
    %v1118 = vpop.f32.mrb[0].mxu0
    %v1119 = vadd.f32 %v1025, %v1118
    %v1120 = vpop.f32.mrb[0].mxu0
    %1121 = vmatprep.mubr.f32.mxu0 0.0
    %1122 = vmatmul.mubr.f32.gmra.mrb[0].mxu0 %v978
    %v1123 = vpop.f32.mrb[0].mxu0
    %v1124 = vadd.f32 %v1025, %v1123
    %v1125 = vpop.f32.mrb[0].mxu0
    %1126 = vmatprep.mubr.f32.mxu0 0.0
    %1127 = vmatmul.mubr.f32.gmra.mrb[0].mxu0 %v979
    %v1128 = vpop.f32.mrb[0].mxu0
    %v1129 = vadd.f32 %v1025, %v1128
    %v1130 = vpop.f32.mrb[0].mxu0
    %1131 = vmatprep.mubr.f32.mxu0 0.0
    %1132 = vmatmul.mubr.f32.gmra.mrb[0].mxu0 %v980
    %v1133 = vpop.f32.mrb[0].mxu0
    %v1134 = vadd.f32 %v1025, %v1133
    %v1135 = vpop.f32.mrb[0].mxu0
    %1136 = vmatprep.mubr.f32.mxu0 0.0
    %1137 = vmatmul.mubr.f32.gmra.mrb[0].mxu0 %v981
    %v1138 = vpop.f32.mrb[0].mxu0
    %v1139 = vadd.f32 %v1025, %v1138
    %v1140 = vpop.f32.mrb[0].mxu0
    %1141 = vmatprep.mubr.f32.mxu0 0.0
    %1142 = vmatmul.mubr.f32.gmra.mrb[0].mxu0 %v982
    %v1143 = vpop.f32.mrb[0].mxu0
    %v1144 = vadd.f32 %v1025, %v1143
    %v1145 = vpop.f32.mrb[0].mxu0
    %1146 = vmatprep.mubr.f32.mxu0 0.0
    %1147 = vmatmul.mubr.f32.gmra.mrb[0].mxu0 %v983
    %v1148 = vpop.f32.mrb[0].mxu0
    %v1149 = vadd.f32 %v1025, %v1148
    %v1150 = vpop.f32.mrb[0].mxu0
    %1151 = vmatprep.mubr.f32.mxu0 0.0
    %1152 = vmatmul.mubr.f32.gmra.mrb[0].mxu0 %v984
    %v1153 = vpop.f32.mrb[0].mxu0
    %v1154 = vadd.f32 %v1025, %v1153
    %v1155 = vpop.f32.mrb[0].mxu0
    %1156 = vmatprep.mubr.f32.mxu0 0.0
    %1157 = vmatmul.mubr.f32.gmra.mrb[0].mxu0 %v985
    %v1158 = vpop.f32.mrb[0].mxu0
    %v1159 = vadd.f32 %v1025, %v1158
    %v1160 = vpop.f32.mrb[0].mxu0
    %1161 = vmatprep.mubr.f32.mxu0 0.0
    %1162 = vmatmul.mubr.f32.gmra.mrb[0].mxu0 %v986
    %v1163 = vpop.f32.mrb[0].mxu0
    %v1164 = vadd.f32 %v1025, %v1163
    %v1165 = vpop.f32.mrb[0].mxu0
    %1166 = vmatprep.mubr.f32.mxu0 0.0
    %1167 = vmatmul.mubr.f32.gmra.mrb[0].mxu0 %v987
    %v1168 = vpop.f32.mrb[0].mxu0
    %v1169 = vadd.f32 %v1025, %v1168
    %v1170 = vpop.f32.mrb[0].mxu0
    %1171 = vmatprep.mubr.f32.mxu0 0.0
    %1172 = vmatmul.mubr.f32.gmra.mrb[0].mxu0 %v988
    %v1173 = vpop.f32.mrb[0].mxu0
    %v1174 = vadd.f32 %v1025, %v1173
    %v1175 = vpop.f32.mrb[0].mxu0
    %1176 = vmatprep.mubr.f32.mxu0 0.0
    %1177 = vmatmul.mubr.f32.gmra.mrb[0].mxu0 %v989
    %v1178 = vpop.f32.mrb[0].mxu0
    %v1179 = vadd.f32 %v1025, %v1178
    %v1180 = vpop.f32.mrb[0].mxu0
    %1181 = vmatprep.mubr.f32.mxu0 0.0
    %1182 = vmatmul.mubr.f32.gmra.mrb[0].mxu0 %v990
    %v1183 = vpop.f32.mrb[0].mxu0
    %v1184 = vadd.f32 %v1025, %v1183
    %v1185 = vpop.f32.mrb[0].mxu0
    %1186 = vmatprep.mubr.f32.mxu0 0.0
    %1187 = vmatmul.mubr.f32.gmra.mrb[0].mxu0 %v991
    %v1188 = vpop.f32.mrb[0].mxu0
    %v1189 = vadd.f32 %v1025, %v1188
    %v1190 = vpop.f32.mrb[0].mxu0
    %1191 = vmatprep.mubr.f32.mxu0 0.0
    %1192 = vmatmul.mubr.f32.gmra.mrb[0].mxu0 %v992
    %v1193 = vpop.f32.mrb[0].mxu0
    %v1194 = vadd.f32 %v1025, %v1193
    %v1195 = vpop.f32.mrb[0].mxu0
    %1196 = vmatprep.mubr.f32.mxu0 0.0
    %1197 = vmatmul.mubr.f32.gmra.mrb[0].mxu0 %v993
    %v1198 = vpop.f32.mrb[0].mxu0
    %v1199 = vadd.f32 %v1025, %v1198
    %v1200 = vpop.f32.mrb[0].mxu0
    %1201 = vmatprep.mubr.f32.mxu0 0.0
    %1202 = vmatmul.mubr.f32.gmra.mrb[0].mxu0 %v994
    %v1203 = vpop.f32.mrb[0].mxu0
    %v1204 = vadd.f32 %v1025, %v1203
    %v1205 = vpop.f32.mrb[0].mxu0
    %1206 = vmatprep.mubr.f32.mxu0 0.0
    %1207 = vmatmul.mubr.f32.gmra.mrb[0].mxu0 %v995
    %v1208 = vpop.f32.mrb[0].mxu0
    %v1209 = vadd.f32 %v1025, %v1208
    %v1210 = vpop.f32.mrb[0].mxu0
    %1211 = vmatprep.mubr.f32.mxu0 0.0
    %1212 = vmatmul.mubr.f32.gmra.mrb[0].mxu0 %v996
    %v1213 = vpop.f32.mrb[0].mxu0
    %v1214 = vadd.f32 %v1025, %v1213
    %v1215 = vpop.f32.mrb[0].mxu0
    %1216 = vmatprep.mubr.f32.mxu0 0.0
    %1217 = vmatmul.mubr.f32.gmra.mrb[0].mxu0 %v997
    %v1218 = vpop.f32.mrb[0].mxu0
    %v1219 = vadd.f32 %v1025, %v1218
    %v1220 = vpop.f32.mrb[0].mxu0
    %1221 = vmatprep.mubr.f32.mxu0 0.0
    %1222 = vmatmul.mubr.f32.gmra.mrb[0].mxu0 %v998
    %v1223 = vpop.f32.mrb[0].mxu0
    %v1224 = vadd.f32 %v1025, %v1223
    %v1225 = vpop.f32.mrb[0].mxu0
    %1226 = vmatprep.mubr.f32.mxu0 0.0
    %1227 = vmatmul.mubr.f32.gmra.mrb[0].mxu0 %v999
    %v1228 = vpop.f32.mrb[0].mxu0
    %v1229 = vadd.f32 %v1025, %v1228
    %v1230 = vpop.f32.mrb[0].mxu0
    %1231 = vmatprep.mubr.f32.mxu0 0.0
    %1232 = vmatmul.mubr.f32.gmra.mrb[0].mxu0 %v1000
    %v1233 = vpop.f32.mrb[0].mxu0
    %v1234 = vadd.f32 %v1025, %v1233
    %v1235 = vpop.f32.mrb[0].mxu0
    %1236 = vmatprep.mubr.f32.mxu0 0.0
    %1237 = vmatmul.mubr.f32.gmra.mrb[0].mxu0 %v1001
    %v1238 = vpop.f32.mrb[0].mxu0
    %v1239 = vadd.f32 %v1025, %v1238
    %v1240 = vpop.f32.mrb[0].mxu0
    %1241 = vmatprep.mubr.f32.mxu0 0.0
    %1242 = vmatmul.mubr.f32.gmra.mrb[0].mxu0 %v1002
    %v1243 = vpop.f32.mrb[0].mxu0
    %v1244 = vadd.f32 %v1025, %v1243
    %v1245 = vpop.f32.mrb[0].mxu0
    %1246 = vmatprep.mubr.f32.mxu0 0.0
    %1247 = vmatmul.mubr.f32.gmra.mrb[0].mxu0 %v1003
    %v1248 = vpop.f32.mrb[0].mxu0
    %v1249 = vadd.f32 %v1025, %v1248
    %v1250 = vpop.f32.mrb[0].mxu0
    %1251 = vdwg.mxu0
    %v1252 = vmax.f32 %v1094, 0.0
    %v1253 = vmax.f32 %v1099, 0.0
    %v1254 = vmax.f32 %v1104, 0.0
    %v1255 = vmax.f32 %v1109, 0.0
    %v1256 = vmax.f32 %v1114, 0.0
    %v1257 = vmax.f32 %v1119, 0.0
    %v1258 = vmax.f32 %v1124, 0.0
    %v1259 = vmax.f32 %v1129, 0.0
    %v1260 = vmax.f32 %v1134, 0.0
    %v1261 = vmax.f32 %v1139, 0.0
    %v1262 = vmax.f32 %v1144, 0.0
    %v1263 = vmax.f32 %v1149, 0.0
    %v1264 = vmax.f32 %v1154, 0.0
    %v1265 = vmax.f32 %v1159, 0.0
    %v1266 = vmax.f32 %v1164, 0.0
    %v1267 = vmax.f32 %v1169, 0.0
    %v1268 = vmax.f32 %v1174, 0.0
    %v1269 = vmax.f32 %v1179, 0.0
    %v1270 = vmax.f32 %v1184, 0.0
    %v1271 = vmax.f32 %v1189, 0.0
    %v1272 = vmax.f32 %v1194, 0.0
    %v1273 = vmax.f32 %v1199, 0.0
    %v1274 = vmax.f32 %v1204, 0.0
    %v1275 = vmax.f32 %v1209, 0.0
    %v1276 = vmax.f32 %v1214, 0.0
    %v1277 = vmax.f32 %v1219, 0.0
    %v1278 = vmax.f32 %v1224, 0.0
    %v1279 = vmax.f32 %v1229, 0.0
    %v1280 = vmax.f32 %v1234, 0.0
    %v1281 = vmax.f32 %v1239, 0.0
    %v1282 = vmax.f32 %v1244, 0.0
    %v1283 = vmax.f32 %v1249, 0.0
    %v1284 = vand.u32 2147483647, %v1094
    %v1285 = vand.u32 2147483647, %v1099
    %v1286 = vand.u32 2147483647, %v1104
    %v1287 = vand.u32 2147483647, %v1109
    %v1288 = vand.u32 2147483647, %v1114
    %v1289 = vand.u32 2147483647, %v1119
    %v1290 = vand.u32 2147483647, %v1124
    %v1291 = vand.u32 2147483647, %v1129
    %v1292 = vand.u32 2147483647, %v1134
    %v1293 = vand.u32 2147483647, %v1139
    %v1294 = vand.u32 2147483647, %v1144
    %v1295 = vand.u32 2147483647, %v1149
    %v1296 = vand.u32 2147483647, %v1154
    %v1297 = vand.u32 2147483647, %v1159
    %v1298 = vand.u32 2147483647, %v1164
    %v1299 = vand.u32 2147483647, %v1169
    %v1300 = vand.u32 2147483647, %v1174
    %v1301 = vand.u32 2147483647, %v1179
    %v1302 = vand.u32 2147483647, %v1184
    %v1303 = vand.u32 2147483647, %v1189
    %v1304 = vand.u32 2147483647, %v1194
    %v1305 = vand.u32 2147483647, %v1199
    %v1306 = vand.u32 2147483647, %v1204
    %v1307 = vand.u32 2147483647, %v1209
    %v1308 = vand.u32 2147483647, %v1214
    %v1309 = vand.u32 2147483647, %v1219
    %v1310 = vand.u32 2147483647, %v1224
    %v1311 = vand.u32 2147483647, %v1229
    %v1312 = vand.u32 2147483647, %v1234
    %v1313 = vand.u32 2147483647, %v1239
    %v1314 = vand.u32 2147483647, %v1244
    %v1315 = vand.u32 2147483647, %v1249
    %v1316 = vsub.f32 0.0, %v1284
    %v1317 = vsub.f32 0.0, %v1285
    %v1318 = vsub.f32 0.0, %v1286
    %v1319 = vsub.f32 0.0, %v1287
    %v1320 = vsub.f32 0.0, %v1288
    %v1321 = vsub.f32 0.0, %v1289
    %v1322 = vsub.f32 0.0, %v1290
    %v1323 = vsub.f32 0.0, %v1291
    %v1324 = vsub.f32 0.0, %v1292
    %v1325 = vsub.f32 0.0, %v1293
    %v1326 = vsub.f32 0.0, %v1294
    %v1327 = vsub.f32 0.0, %v1295
    %v1328 = vsub.f32 0.0, %v1296
    %v1329 = vsub.f32 0.0, %v1297
    %v1330 = vsub.f32 0.0, %v1298
    %v1331 = vsub.f32 0.0, %v1299
    %v1332 = vsub.f32 0.0, %v1300
    %v1333 = vsub.f32 0.0, %v1301
    %v1334 = vsub.f32 0.0, %v1302
    %v1335 = vsub.f32 0.0, %v1303
    %v1336 = vsub.f32 0.0, %v1304
    %v1337 = vsub.f32 0.0, %v1305
    %v1338 = vsub.f32 0.0, %v1306
    %v1339 = vsub.f32 0.0, %v1307
    %v1340 = vsub.f32 0.0, %v1308
    %v1341 = vsub.f32 0.0, %v1309
    %v1342 = vsub.f32 0.0, %v1310
    %v1343 = vsub.f32 0.0, %v1311
    %v1344 = vsub.f32 0.0, %v1312
    %v1345 = vsub.f32 0.0, %v1313
    %v1346 = vsub.f32 0.0, %v1314
    %v1347 = vsub.f32 0.0, %v1315
    %v1348 = vmul.f32 %v1316, 1.442695
    %v1349 = vpow.pop %v1348
    %v1350 = vmul.f32 %v1317, 1.442695
    %v1351 = vpow.pop %v1350
    %v1352 = vmul.f32 %v1318, 1.442695
    %v1353 = vpow.pop %v1352
    %v1354 = vmul.f32 %v1319, 1.442695
    %v1355 = vpow.pop %v1354
    %v1356 = vmul.f32 %v1320, 1.442695
    %v1357 = vpow.pop %v1356
    %v1358 = vmul.f32 %v1321, 1.442695
    %v1359 = vpow.pop %v1358
    %v1360 = vmul.f32 %v1322, 1.442695
    %v1361 = vpow.pop %v1360
    %v1362 = vmul.f32 %v1323, 1.442695
    %v1363 = vpow.pop %v1362
    %v1364 = vmul.f32 %v1324, 1.442695
    %v1365 = vpow.pop %v1364
    %v1366 = vmul.f32 %v1325, 1.442695
    %v1367 = vpow.pop %v1366
    %v1368 = vmul.f32 %v1326, 1.442695
    %v1369 = vpow.pop %v1368
    %v1370 = vmul.f32 %v1327, 1.442695
    %v1371 = vpow.pop %v1370
    %v1372 = vmul.f32 %v1328, 1.442695
    %v1373 = vpow.pop %v1372
    %v1374 = vmul.f32 %v1329, 1.442695
    %v1375 = vpow.pop %v1374
    %v1376 = vmul.f32 %v1330, 1.442695
    %v1377 = vpow.pop %v1376
    %v1378 = vmul.f32 %v1331, 1.442695
    %v1379 = vpow.pop %v1378
    %v1380 = vmul.f32 %v1332, 1.442695
    %v1381 = vpow.pop %v1380
    %v1382 = vmul.f32 %v1333, 1.442695
    %v1383 = vpow.pop %v1382
    %v1384 = vmul.f32 %v1334, 1.442695
    %v1385 = vpow.pop %v1384
    %v1386 = vmul.f32 %v1335, 1.442695
    %v1387 = vpow.pop %v1386
    %v1388 = vmul.f32 %v1336, 1.442695
    %v1389 = vpow.pop %v1388
    %v1390 = vmul.f32 %v1337, 1.442695
    %v1391 = vpow.pop %v1390
    %v1392 = vmul.f32 %v1338, 1.442695
    %v1393 = vpow.pop %v1392
    %v1394 = vmul.f32 %v1339, 1.442695
    %v1395 = vpow.pop %v1394
    %v1396 = vmul.f32 %v1340, 1.442695
    %v1397 = vpow.pop %v1396
    %v1398 = vmul.f32 %v1341, 1.442695
    %v1399 = vpow.pop %v1398
    %v1400 = vmul.f32 %v1342, 1.442695
    %v1401 = vpow.pop %v1400
    %v1402 = vmul.f32 %v1343, 1.442695
    %v1403 = vpow.pop %v1402
    %v1404 = vmul.f32 %v1344, 1.442695
    %v1405 = vpow.pop %v1404
    %v1406 = vmul.f32 %v1345, 1.442695
    %v1407 = vpow.pop %v1406
    %v1408 = vmul.f32 %v1346, 1.442695
    %v1409 = vpow.pop %v1408
    %v1410 = vmul.f32 %v1347, 1.442695
    %v1411 = vpow.pop %v1410
    %v1412 = vadd.f32 %v1349, 1.0
    %v1413 = vlog2.pop %v1412
    %v1414 = vmul.f32 %v1413, 0.6931472
    %v1415 = vmul.f32 -0.5, %v1349
    %v1416 = vadd.f32 %v1415, 1.0
    %v1417 = vmul.f32 %v1416, %v1349
    %v1418 = vand.u32 2147483647, %v1349
    %vm1419 = vcmp.lt.f32.partialorder %v1418, 0.0004427343
    %v1420 = vsel %vm1419, %v1417, %v1414
    %v1421 = vadd.f32 %v1351, 1.0
    %v1422 = vlog2.pop %v1421
    %v1423 = vmul.f32 %v1422, 0.6931472
    %v1424 = vmul.f32 -0.5, %v1351
    %v1425 = vadd.f32 %v1424, 1.0
    %v1426 = vmul.f32 %v1425, %v1351
    %v1427 = vand.u32 2147483647, %v1351
    %vm1428 = vcmp.lt.f32.partialorder %v1427, 0.0004427343
    %v1429 = vsel %vm1428, %v1426, %v1423
    %v1430 = vadd.f32 %v1353, 1.0
    %v1431 = vlog2.pop %v1430
    %v1432 = vmul.f32 %v1431, 0.6931472
    %v1433 = vmul.f32 -0.5, %v1353
    %v1434 = vadd.f32 %v1433, 1.0
    %v1435 = vmul.f32 %v1434, %v1353
    %v1436 = vand.u32 2147483647, %v1353
    %vm1437 = vcmp.lt.f32.partialorder %v1436, 0.0004427343
    %v1438 = vsel %vm1437, %v1435, %v1432
    %v1439 = vadd.f32 %v1355, 1.0
    %v1440 = vlog2.pop %v1439
    %v1441 = vmul.f32 %v1440, 0.6931472
    %v1442 = vmul.f32 -0.5, %v1355
    %v1443 = vadd.f32 %v1442, 1.0
    %v1444 = vmul.f32 %v1443, %v1355
    %v1445 = vand.u32 2147483647, %v1355
    %vm1446 = vcmp.lt.f32.partialorder %v1445, 0.0004427343
    %v1447 = vsel %vm1446, %v1444, %v1441
    %v1448 = vadd.f32 %v1357, 1.0
    %v1449 = vlog2.pop %v1448
    %v1450 = vmul.f32 %v1449, 0.6931472
    %v1451 = vmul.f32 -0.5, %v1357
    %v1452 = vadd.f32 %v1451, 1.0
    %v1453 = vmul.f32 %v1452, %v1357
    %v1454 = vand.u32 2147483647, %v1357
    %vm1455 = vcmp.lt.f32.partialorder %v1454, 0.0004427343
    %v1456 = vsel %vm1455, %v1453, %v1450
    %v1457 = vadd.f32 %v1359, 1.0
    %v1458 = vlog2.pop %v1457
    %v1459 = vmul.f32 %v1458, 0.6931472
    %v1460 = vmul.f32 -0.5, %v1359
    %v1461 = vadd.f32 %v1460, 1.0
    %v1462 = vmul.f32 %v1461, %v1359
    %v1463 = vand.u32 2147483647, %v1359
    %vm1464 = vcmp.lt.f32.partialorder %v1463, 0.0004427343
    %v1465 = vsel %vm1464, %v1462, %v1459
    %v1466 = vadd.f32 %v1361, 1.0
    %v1467 = vlog2.pop %v1466
    %v1468 = vmul.f32 %v1467, 0.6931472
    %v1469 = vmul.f32 -0.5, %v1361
    %v1470 = vadd.f32 %v1469, 1.0
    %v1471 = vmul.f32 %v1470, %v1361
    %v1472 = vand.u32 2147483647, %v1361
    %vm1473 = vcmp.lt.f32.partialorder %v1472, 0.0004427343
    %v1474 = vsel %vm1473, %v1471, %v1468
    %v1475 = vadd.f32 %v1363, 1.0
    %v1476 = vlog2.pop %v1475
    %v1477 = vmul.f32 %v1476, 0.6931472
    %v1478 = vmul.f32 -0.5, %v1363
    %v1479 = vadd.f32 %v1478, 1.0
    %v1480 = vmul.f32 %v1479, %v1363
    %v1481 = vand.u32 2147483647, %v1363
    %vm1482 = vcmp.lt.f32.partialorder %v1481, 0.0004427343
    %v1483 = vsel %vm1482, %v1480, %v1477
    %v1484 = vadd.f32 %v1365, 1.0
    %v1485 = vlog2.pop %v1484
    %v1486 = vmul.f32 %v1485, 0.6931472
    %v1487 = vmul.f32 -0.5, %v1365
    %v1488 = vadd.f32 %v1487, 1.0
    %v1489 = vmul.f32 %v1488, %v1365
    %v1490 = vand.u32 2147483647, %v1365
    %vm1491 = vcmp.lt.f32.partialorder %v1490, 0.0004427343
    %v1492 = vsel %vm1491, %v1489, %v1486
    %v1493 = vadd.f32 %v1367, 1.0
    %v1494 = vlog2.pop %v1493
    %v1495 = vmul.f32 %v1494, 0.6931472
    %v1496 = vmul.f32 -0.5, %v1367
    %v1497 = vadd.f32 %v1496, 1.0
    %v1498 = vmul.f32 %v1497, %v1367
    %v1499 = vand.u32 2147483647, %v1367
    %vm1500 = vcmp.lt.f32.partialorder %v1499, 0.0004427343
    %v1501 = vsel %vm1500, %v1498, %v1495
    %v1502 = vadd.f32 %v1369, 1.0
    %v1503 = vlog2.pop %v1502
    %v1504 = vmul.f32 %v1503, 0.6931472
    %v1505 = vmul.f32 -0.5, %v1369
    %v1506 = vadd.f32 %v1505, 1.0
    %v1507 = vmul.f32 %v1506, %v1369
    %v1508 = vand.u32 2147483647, %v1369
    %vm1509 = vcmp.lt.f32.partialorder %v1508, 0.0004427343
    %v1510 = vsel %vm1509, %v1507, %v1504
    %v1511 = vadd.f32 %v1371, 1.0
    %v1512 = vlog2.pop %v1511
    %v1513 = vmul.f32 %v1512, 0.6931472
    %v1514 = vmul.f32 -0.5, %v1371
    %v1515 = vadd.f32 %v1514, 1.0
    %v1516 = vmul.f32 %v1515, %v1371
    %v1517 = vand.u32 2147483647, %v1371
    %vm1518 = vcmp.lt.f32.partialorder %v1517, 0.0004427343
    %v1519 = vsel %vm1518, %v1516, %v1513
    %v1520 = vadd.f32 %v1373, 1.0
    %v1521 = vlog2.pop %v1520
    %v1522 = vmul.f32 %v1521, 0.6931472
    %v1523 = vmul.f32 -0.5, %v1373
    %v1524 = vadd.f32 %v1523, 1.0
    %v1525 = vmul.f32 %v1524, %v1373
    %v1526 = vand.u32 2147483647, %v1373
    %vm1527 = vcmp.lt.f32.partialorder %v1526, 0.0004427343
    %v1528 = vsel %vm1527, %v1525, %v1522
    %v1529 = vadd.f32 %v1375, 1.0
    %v1530 = vlog2.pop %v1529
    %v1531 = vmul.f32 %v1530, 0.6931472
    %v1532 = vmul.f32 -0.5, %v1375
    %v1533 = vadd.f32 %v1532, 1.0
    %v1534 = vmul.f32 %v1533, %v1375
    %v1535 = vand.u32 2147483647, %v1375
    %vm1536 = vcmp.lt.f32.partialorder %v1535, 0.0004427343
    %v1537 = vsel %vm1536, %v1534, %v1531
    %v1538 = vadd.f32 %v1377, 1.0
    %v1539 = vlog2.pop %v1538
    %v1540 = vmul.f32 %v1539, 0.6931472
    %v1541 = vmul.f32 -0.5, %v1377
    %v1542 = vadd.f32 %v1541, 1.0
    %v1543 = vmul.f32 %v1542, %v1377
    %v1544 = vand.u32 2147483647, %v1377
    %vm1545 = vcmp.lt.f32.partialorder %v1544, 0.0004427343
    %v1546 = vsel %vm1545, %v1543, %v1540
    %v1547 = vadd.f32 %v1379, 1.0
    %v1548 = vlog2.pop %v1547
    %v1549 = vmul.f32 %v1548, 0.6931472
    %v1550 = vmul.f32 -0.5, %v1379
    %v1551 = vadd.f32 %v1550, 1.0
    %v1552 = vmul.f32 %v1551, %v1379
    %v1553 = vand.u32 2147483647, %v1379
    %vm1554 = vcmp.lt.f32.partialorder %v1553, 0.0004427343
    %v1555 = vsel %vm1554, %v1552, %v1549
    %v1556 = vadd.f32 %v1381, 1.0
    %v1557 = vlog2.pop %v1556
    %v1558 = vmul.f32 %v1557, 0.6931472
    %v1559 = vmul.f32 -0.5, %v1381
    %v1560 = vadd.f32 %v1559, 1.0
    %v1561 = vmul.f32 %v1560, %v1381
    %v1562 = vand.u32 2147483647, %v1381
    %vm1563 = vcmp.lt.f32.partialorder %v1562, 0.0004427343
    %v1564 = vsel %vm1563, %v1561, %v1558
    %v1565 = vadd.f32 %v1383, 1.0
    %v1566 = vlog2.pop %v1565
    %v1567 = vmul.f32 %v1566, 0.6931472
    %v1568 = vmul.f32 -0.5, %v1383
    %v1569 = vadd.f32 %v1568, 1.0
    %v1570 = vmul.f32 %v1569, %v1383
    %v1571 = vand.u32 2147483647, %v1383
    %vm1572 = vcmp.lt.f32.partialorder %v1571, 0.0004427343
    %v1573 = vsel %vm1572, %v1570, %v1567
    %v1574 = vadd.f32 %v1385, 1.0
    %v1575 = vlog2.pop %v1574
    %v1576 = vmul.f32 %v1575, 0.6931472
    %v1577 = vmul.f32 -0.5, %v1385
    %v1578 = vadd.f32 %v1577, 1.0
    %v1579 = vmul.f32 %v1578, %v1385
    %v1580 = vand.u32 2147483647, %v1385
    %vm1581 = vcmp.lt.f32.partialorder %v1580, 0.0004427343
    %v1582 = vsel %vm1581, %v1579, %v1576
    %v1583 = vadd.f32 %v1387, 1.0
    %v1584 = vlog2.pop %v1583
    %v1585 = vmul.f32 %v1584, 0.6931472
    %v1586 = vmul.f32 -0.5, %v1387
    %v1587 = vadd.f32 %v1586, 1.0
    %v1588 = vmul.f32 %v1587, %v1387
    %v1589 = vand.u32 2147483647, %v1387
    %vm1590 = vcmp.lt.f32.partialorder %v1589, 0.0004427343
    %v1591 = vsel %vm1590, %v1588, %v1585
    %v1592 = vadd.f32 %v1389, 1.0
    %v1593 = vlog2.pop %v1592
    %v1594 = vmul.f32 %v1593, 0.6931472
    %v1595 = vmul.f32 -0.5, %v1389
    %v1596 = vadd.f32 %v1595, 1.0
    %v1597 = vmul.f32 %v1596, %v1389
    %v1598 = vand.u32 2147483647, %v1389
    %vm1599 = vcmp.lt.f32.partialorder %v1598, 0.0004427343
    %v1600 = vsel %vm1599, %v1597, %v1594
    %v1601 = vadd.f32 %v1391, 1.0
    %v1602 = vlog2.pop %v1601
    %v1603 = vmul.f32 %v1602, 0.6931472
    %v1604 = vmul.f32 -0.5, %v1391
    %v1605 = vadd.f32 %v1604, 1.0
    %v1606 = vmul.f32 %v1605, %v1391
    %v1607 = vand.u32 2147483647, %v1391
    %vm1608 = vcmp.lt.f32.partialorder %v1607, 0.0004427343
    %v1609 = vsel %vm1608, %v1606, %v1603
    %v1610 = vadd.f32 %v1393, 1.0
    %v1611 = vlog2.pop %v1610
    %v1612 = vmul.f32 %v1611, 0.6931472
    %v1613 = vmul.f32 -0.5, %v1393
    %v1614 = vadd.f32 %v1613, 1.0
    %v1615 = vmul.f32 %v1614, %v1393
    %v1616 = vand.u32 2147483647, %v1393
    %vm1617 = vcmp.lt.f32.partialorder %v1616, 0.0004427343
    %v1618 = vsel %vm1617, %v1615, %v1612
    %v1619 = vadd.f32 %v1395, 1.0
    %v1620 = vlog2.pop %v1619
    %v1621 = vmul.f32 %v1620, 0.6931472
    %v1622 = vmul.f32 -0.5, %v1395
    %v1623 = vadd.f32 %v1622, 1.0
    %v1624 = vmul.f32 %v1623, %v1395
    %v1625 = vand.u32 2147483647, %v1395
    %vm1626 = vcmp.lt.f32.partialorder %v1625, 0.0004427343
    %v1627 = vsel %vm1626, %v1624, %v1621
    %v1628 = vadd.f32 %v1397, 1.0
    %v1629 = vlog2.pop %v1628
    %v1630 = vmul.f32 %v1629, 0.6931472
    %v1631 = vmul.f32 -0.5, %v1397
    %v1632 = vadd.f32 %v1631, 1.0
    %v1633 = vmul.f32 %v1632, %v1397
    %v1634 = vand.u32 2147483647, %v1397
    %vm1635 = vcmp.lt.f32.partialorder %v1634, 0.0004427343
    %v1636 = vsel %vm1635, %v1633, %v1630
    %v1637 = vadd.f32 %v1399, 1.0
    %v1638 = vlog2.pop %v1637
    %v1639 = vmul.f32 %v1638, 0.6931472
    %v1640 = vmul.f32 -0.5, %v1399
    %v1641 = vadd.f32 %v1640, 1.0
    %v1642 = vmul.f32 %v1641, %v1399
    %v1643 = vand.u32 2147483647, %v1399
    %vm1644 = vcmp.lt.f32.partialorder %v1643, 0.0004427343
    %v1645 = vsel %vm1644, %v1642, %v1639
    %v1646 = vadd.f32 %v1401, 1.0
    %v1647 = vlog2.pop %v1646
    %v1648 = vmul.f32 %v1647, 0.6931472
    %v1649 = vmul.f32 -0.5, %v1401
    %v1650 = vadd.f32 %v1649, 1.0
    %v1651 = vmul.f32 %v1650, %v1401
    %v1652 = vand.u32 2147483647, %v1401
    %vm1653 = vcmp.lt.f32.partialorder %v1652, 0.0004427343
    %v1654 = vsel %vm1653, %v1651, %v1648
    %v1655 = vadd.f32 %v1403, 1.0
    %v1656 = vlog2.pop %v1655
    %v1657 = vmul.f32 %v1656, 0.6931472
    %v1658 = vmul.f32 -0.5, %v1403
    %v1659 = vadd.f32 %v1658, 1.0
    %v1660 = vmul.f32 %v1659, %v1403
    %v1661 = vand.u32 2147483647, %v1403
    %vm1662 = vcmp.lt.f32.partialorder %v1661, 0.0004427343
    %v1663 = vsel %vm1662, %v1660, %v1657
    %v1664 = vadd.f32 %v1405, 1.0
    %v1665 = vlog2.pop %v1664
    %v1666 = vmul.f32 %v1665, 0.6931472
    %v1667 = vmul.f32 -0.5, %v1405
    %v1668 = vadd.f32 %v1667, 1.0
    %v1669 = vmul.f32 %v1668, %v1405
    %v1670 = vand.u32 2147483647, %v1405
    %vm1671 = vcmp.lt.f32.partialorder %v1670, 0.0004427343
    %v1672 = vsel %vm1671, %v1669, %v1666
    %v1673 = vadd.f32 %v1407, 1.0
    %v1674 = vlog2.pop %v1673
    %v1675 = vmul.f32 %v1674, 0.6931472
    %v1676 = vmul.f32 -0.5, %v1407
    %v1677 = vadd.f32 %v1676, 1.0
    %v1678 = vmul.f32 %v1677, %v1407
    %v1679 = vand.u32 2147483647, %v1407
    %vm1680 = vcmp.lt.f32.partialorder %v1679, 0.0004427343
    %v1681 = vsel %vm1680, %v1678, %v1675
    %v1682 = vadd.f32 %v1409, 1.0
    %v1683 = vlog2.pop %v1682
    %v1684 = vmul.f32 %v1683, 0.6931472
    %v1685 = vmul.f32 -0.5, %v1409
    %v1686 = vadd.f32 %v1685, 1.0
    %v1687 = vmul.f32 %v1686, %v1409
    %v1688 = vand.u32 2147483647, %v1409
    %vm1689 = vcmp.lt.f32.partialorder %v1688, 0.0004427343
    %v1690 = vsel %vm1689, %v1687, %v1684
    %v1691 = vadd.f32 %v1411, 1.0
    %v1692 = vlog2.pop %v1691
    %v1693 = vmul.f32 %v1692, 0.6931472
    %v1694 = vmul.f32 -0.5, %v1411
    %v1695 = vadd.f32 %v1694, 1.0
    %v1696 = vmul.f32 %v1695, %v1411
    %v1697 = vand.u32 2147483647, %v1411
    %vm1698 = vcmp.lt.f32.partialorder %v1697, 0.0004427343
    %v1699 = vsel %vm1698, %v1696, %v1693
    %v1700 = vadd.f32 %v1252, %v1420
    %v1701 = vadd.f32 %v1253, %v1429
    %v1702 = vadd.f32 %v1254, %v1438
    %v1703 = vadd.f32 %v1255, %v1447
    %v1704 = vadd.f32 %v1256, %v1456
    %v1705 = vadd.f32 %v1257, %v1465
    %v1706 = vadd.f32 %v1258, %v1474
    %v1707 = vadd.f32 %v1259, %v1483
    %v1708 = vadd.f32 %v1260, %v1492
    %v1709 = vadd.f32 %v1261, %v1501
    %v1710 = vadd.f32 %v1262, %v1510
    %v1711 = vadd.f32 %v1263, %v1519
    %v1712 = vadd.f32 %v1264, %v1528
    %v1713 = vadd.f32 %v1265, %v1537
    %v1714 = vadd.f32 %v1266, %v1546
    %v1715 = vadd.f32 %v1267, %v1555
    %v1716 = vadd.f32 %v1268, %v1564
    %v1717 = vadd.f32 %v1269, %v1573
    %v1718 = vadd.f32 %v1270, %v1582
    %v1719 = vadd.f32 %v1271, %v1591
    %v1720 = vadd.f32 %v1272, %v1600
    %v1721 = vadd.f32 %v1273, %v1609
    %v1722 = vadd.f32 %v1274, %v1618
    %v1723 = vadd.f32 %v1275, %v1627
    %v1724 = vadd.f32 %v1276, %v1636
    %v1725 = vadd.f32 %v1277, %v1645
    %v1726 = vadd.f32 %v1278, %v1654
    %v1727 = vadd.f32 %v1279, %v1663
    %v1728 = vadd.f32 %v1280, %v1672
    %v1729 = vadd.f32 %v1281, %v1681
    %v1730 = vadd.f32 %v1282, %v1690
    %v1731 = vadd.f32 %v1283, %v1699
    %v1732 = vadd.f32 %v1700, 1.0
    %v1733 = vadd.f32 %v1701, 1.0
    %v1734 = vadd.f32 %v1702, 1.0
    %v1735 = vadd.f32 %v1703, 1.0
    %v1736 = vadd.f32 %v1704, 1.0
    %v1737 = vadd.f32 %v1705, 1.0
    %v1738 = vadd.f32 %v1706, 1.0
    %v1739 = vadd.f32 %v1707, 1.0
    %v1740 = vadd.f32 %v1708, 1.0
    %v1741 = vadd.f32 %v1709, 1.0
    %v1742 = vadd.f32 %v1710, 1.0
    %v1743 = vadd.f32 %v1711, 1.0
    %v1744 = vadd.f32 %v1712, 1.0
    %v1745 = vadd.f32 %v1713, 1.0
    %v1746 = vadd.f32 %v1714, 1.0
    %v1747 = vadd.f32 %v1715, 1.0
    %v1748 = vadd.f32 %v1716, 1.0
    %v1749 = vadd.f32 %v1717, 1.0
    %v1750 = vadd.f32 %v1718, 1.0
    %v1751 = vadd.f32 %v1719, 1.0
    %v1752 = vadd.f32 %v1720, 1.0
    %v1753 = vadd.f32 %v1721, 1.0
    %v1754 = vadd.f32 %v1722, 1.0
    %v1755 = vadd.f32 %v1723, 1.0
    %v1756 = vadd.f32 %v1724, 1.0
    %v1757 = vadd.f32 %v1725, 1.0
    %v1758 = vadd.f32 %v1726, 1.0
    %v1759 = vadd.f32 %v1727, 1.0
    %v1760 = vadd.f32 %v1728, 1.0
    %v1761 = vadd.f32 %v1729, 1.0
    %v1762 = vadd.f32 %v1730, 1.0
    %v1763 = vadd.f32 %v1731, 1.0
    %1764 = vst [vmem:[#allocation5] sm:$0xff] %v1732
    %1765 = vst [vmem:[#allocation5 + $0x8] sm:$0xff] %v1733
    %1766 = vst [vmem:[#allocation5 + $0x10] sm:$0xff] %v1734
    %1767 = vst [vmem:[#allocation5 + $0x18] sm:$0xff] %v1735
    %1768 = vst [vmem:[#allocation5 + $0x20] sm:$0xff] %v1736
    %1769 = vst [vmem:[#allocation5 + $0x28] sm:$0xff] %v1737
    %1770 = vst [vmem:[#allocation5 + $0x30] sm:$0xff] %v1738
    %1771 = vst [vmem:[#allocation5 + $0x38] sm:$0xff] %v1739
    %1772 = vst [vmem:[#allocation5 + $0x40] sm:$0xff] %v1740
    %1773 = vst [vmem:[#allocation5 + $0x48] sm:$0xff] %v1741
    %1774 = vst [vmem:[#allocation5 + $0x50] sm:$0xff] %v1742
    %1775 = vst [vmem:[#allocation5 + $0x58] sm:$0xff] %v1743
    %1776 = vst [vmem:[#allocation5 + $0x60] sm:$0xff] %v1744
    %1777 = vst [vmem:[#allocation5 + $0x68] sm:$0xff] %v1745
    %1778 = vst [vmem:[#allocation5 + $0x70] sm:$0xff] %v1746
    %1779 = vst [vmem:[#allocation5 + $0x78] sm:$0xff] %v1747
    %1780 = vst [vmem:[#allocation5 + $0x80] sm:$0xff] %v1748
    %1781 = vst [vmem:[#allocation5 + $0x88] sm:$0xff] %v1749
    %1782 = vst [vmem:[#allocation5 + $0x90] sm:$0xff] %v1750
    %1783 = vst [vmem:[#allocation5 + $0x98] sm:$0xff] %v1751
    %1784 = vst [vmem:[#allocation5 + $0xa0] sm:$0xff] %v1752
    %1785 = vst [vmem:[#allocation5 + $0xa8] sm:$0xff] %v1753
    %1786 = vst [vmem:[#allocation5 + $0xb0] sm:$0xff] %v1754
    %1787 = vst [vmem:[#allocation5 + $0xb8] sm:$0xff] %v1755
    %1788 = vst [vmem:[#allocation5 + $0xc0] sm:$0xff] %v1756
    %1789 = vst [vmem:[#allocation5 + $0xc8] sm:$0xff] %v1757
    %1790 = vst [vmem:[#allocation5 + $0xd0] sm:$0xff] %v1758
    %1791 = vst [vmem:[#allocation5 + $0xd8] sm:$0xff] %v1759
    %1792 = vst [vmem:[#allocation5 + $0xe0] sm:$0xff] %v1760
    %1793 = vst [vmem:[#allocation5 + $0xe8] sm:$0xff] %v1761
    %1794 = vst [vmem:[#allocation5 + $0xf0] sm:$0xff] %v1762
    %1795 = vst [vmem:[#allocation5 + $0xf8] sm:$0xff] %v1763
    // Predicated region
    $region42: #{tpu_custom_call.1} parent=1 // pred_check
      _
    $region43: #{tpu_custom_call.1} parent=1 // pred_check_branch
      %1797 = sbr.rel (0) target = $region45
    $region44: #{tpu_custom_call.1} parent=1 // pred_region
      %s1799 = ssub.s32 4096, 4096
      %1800 = vsyncadd [#allocation4], %s1799
      %s1801 = sshll.u32 [#allocation5], 4
      %s1802 = int_to_ptr.vmem [resolvable:$true] %s1801
      %1807 = dma.vmem_to_hbm [thread:$0]  %s1802, 4096, %s9, [#allocation4], 128, 128, 8
    $region45: #{tpu_custom_call.1} parent=1 // pred_fallthru
      _
    // Predicated region
    $region46: #{tpu_custom_call.1} parent=1 // pred_check
      _
    $region47: #{tpu_custom_call.1} parent=1 // pred_check_branch
      %1809 = sbr.rel (0) target = $region49
    $region48: #{tpu_custom_call.1} parent=1 // pred_region
      %1810 = dma.done [#allocation4], 4096
    $region49: #{tpu_custom_call.1} parent=1 // pred_fallthru
      _
    %1811 = vsyncpa [#allocation3], 1
    %1812 = vsyncpa [#allocation4], 1

</llo_original>
